<compile_context>
chip_gen: v7x
topology: tpu7x:2x2x1
jax: 0.10.0
libtpu: 0.0.40
codegen_flags: <defaults>
</compile_context>

<pallas_src>
import functools

import jax
import jax.numpy as jnp
from jax import lax
from jax.experimental import pallas as pl
from jax.experimental.pallas import tpu as pltpu

FEATURE_DIM = 2048          # inception pool5 feature size (fc = Identity)
DROPOUT_KEEP_PROB = 0.8     # module default
BN_EPS = 0.001              # BatchNorm1d(2048, eps=0.001)
STEM_CH = 128               # stem channels padded to a full 128-lane width
SUBLANE = 8
TILE_S_MAX = 1024           # spatial-patch rows per grid step (fewer steps)


def _round_up(x, m):
    return ((x + m - 1) // m) * m


# ----------------------------------------------------------------------------
# Kernel 1: fused conv stem (im2col matmul) + ReLU + global average pool +
#           projection to FEATURE_DIM.
# grid = (batch, spatial_tiles); spatial axis is a reduction ("arbitrary"),
# pooled sum accumulates in a VMEM scratch and the 128->2048 projection runs
# on the last spatial tile, so the 128-wide stem activation never hits HBM.
# ----------------------------------------------------------------------------
def _fused_stem_pool_proj_kernel(x_ref, ws_ref, bs_ref, wp_ref, bp_ref,
                                 o_ref, acc_ref, *, tile_s, s_valid):
    j = pl.program_id(1)

    @pl.when(j == 0)
    def _():
        acc_ref[...] = jnp.zeros_like(acc_ref)

    x = x_ref[0]                                          # (tile_s, k_pad) bf16
    stem = jnp.dot(x, ws_ref[...], preferred_element_type=jnp.float32)
    stem = jnp.maximum(stem + bs_ref[...], 0.0)           # (tile_s, STEM_CH) f32

    # Zero the contribution of zero-padded spatial rows (bias + ReLU != 0).
    row = j * tile_s + lax.broadcasted_iota(jnp.int32, (tile_s, 1), 0)
    stem = jnp.where(row < s_valid, stem, 0.0)

    acc_ref[...] += jnp.sum(stem, axis=0, keepdims=True)  # (1, STEM_CH)

    @pl.when(j == pl.num_programs(1) - 1)
    def _():
        pooled = acc_ref[...] * (1.0 / s_valid)           # global average pool
        feats = jnp.dot(pooled.astype(wp_ref.dtype), wp_ref[...],
                        preferred_element_type=jnp.float32) + bp_ref[...]
        o_ref[0] = feats                                  # (1, FEATURE_DIM)


# ----------------------------------------------------------------------------
# Kernel 2: fused Dropout (training) + BatchNorm1d (training, batch stats),
# tiled over the 2048 feature lanes (statistics are per-feature).
# Dropout randomness: counter-based int32 hash of (row, global feature index,
# seed). Pure VPU integer ops -> lowers on TPU AND in interpret mode.
# ----------------------------------------------------------------------------
def _dropout_bn_kernel(seed_ref, x_ref, gamma_ref, beta_ref, o_ref):
    n, tf = x_ref.shape
    tile = pl.program_id(0)

    # --- dropout mask via a murmur-style integer finalizer (wraps mod 2^32) ---
    row = lax.broadcasted_iota(jnp.int32, (n, tf), 0)
    col = lax.broadcasted_iota(jnp.int32, (n, tf), 1) + tile * tf
    h = seed_ref[0] + row * jnp.int32(0x0019660D) + col * jnp.int32(0x3C6EF35F)
    h = (h ^ lax.shift_right_logical(h, 16)) * jnp.int32(0x7FEB352D)
    h = (h ^ lax.shift_right_logical(h, 15)) * jnp.int32(-2073516405)  # 0x846CA68B
    h = h ^ lax.shift_right_logical(h, 16)
    bits = jnp.bitwise_and(h, jnp.int32(0x7FFFFF))        # 23 uniform bits >= 0
    u = bits.astype(jnp.float32) * (1.0 / (1 << 23))      # uniform in [0, 1)
    keep = u < DROPOUT_KEEP_PROB
    x = jnp.where(keep, x_ref[...] * (1.0 / DROPOUT_KEEP_PROB), 0.0)

    # --- batchnorm (training mode: biased batch statistics, eps=1e-3) ---
    mean = jnp.mean(x, axis=0, keepdims=True)
    var = jnp.mean((x - mean) ** 2, axis=0, keepdims=True)
    xn = (x - mean) * lax.rsqrt(var + BN_EPS)
    o_ref[...] = xn * gamma_ref[...] + beta_ref[...]


# ----------------------------------------------------------------------------
# Glue (plain JAX): im2col patch extraction + parameter setup
# ----------------------------------------------------------------------------
def extract_patches_nhwc(x, ksize=3, stride=2):
    # TODO(synk): for very large images the im2col expansion could be done
    # in-kernel with strided taps to avoid the 9x HBM blow-up; here it stays in
    # XLA but is emitted in bf16 to halve the traffic.
    N, H, W, C = x.shape
    out_h = (H - ksize) // stride + 1
    out_w = (W - ksize) // stride + 1
    pieces = []
    for i in range(ksize):
        for j in range(ksize):
            pieces.append(
                x[:, i:i + stride * out_h:stride, j:j + stride * out_w:stride, :])
    patches = jnp.concatenate(pieces, axis=-1)  # (N, out_h, out_w, k*k*C)
    return patches, out_h, out_w


def make_params(key, in_ch=3):
    k1, k2, k3, k4, k5, k6 = jax.random.split(key, 6)
    kpatch = 3 * 3 * in_ch
    w_stem = jax.random.normal(k1, (kpatch, STEM_CH), jnp.float32) * 0.1
    b_stem = jax.random.normal(k2, (1, STEM_CH), jnp.float32) * 0.01
    w_proj = jax.random.normal(k3, (STEM_CH, FEATURE_DIM), jnp.float32) * 0.05
    b_proj = jax.random.normal(k4, (1, FEATURE_DIM), jnp.float32) * 0.01
    gamma = 1.0 + 0.1 * jax.random.normal(k5, (1, FEATURE_DIM), jnp.float32)
    beta = 0.1 * jax.random.normal(k6, (1, FEATURE_DIM), jnp.float32)
    return dict(w_stem=w_stem, b_stem=b_stem, w_proj=w_proj, b_proj=b_proj,
                gamma=gamma, beta=beta)


def inception_v3_embedding(images_nchw, params, seed=0, is_training=True):
    """Forward pass. images_nchw: (N, 3, H, W) float32 -> (N, 2048) float32."""
    # TODO(synk): the pretrained torchvision InceptionV3 backbone is replaced
    # by a representative stem + pool + projection; the dropout/batchnorm head
    # matches the reference module exactly.
    x = jnp.transpose(images_nchw, (0, 2, 3, 1)).astype(jnp.bfloat16)  # NHWC
    N = x.shape[0]

    patches, out_h, out_w = extract_patches_nhwc(x, ksize=3, stride=2)
    kpatch = patches.shape[-1]
    S = out_h * out_w

    # Pad K and the spatial axis to TPU-friendly sizes.
    k_pad = _round_up(kpatch, 32)
    tile_s = min(TILE_S_MAX, _round_up(S, SUBLANE))
    s_pad = _round_up(S, tile_s)
    num_s_tiles = s_pad // tile_s

    patches3d = patches.reshape(N, S, kpatch)
    patches3d = jnp.pad(patches3d, ((0, 0), (0, s_pad - S), (0, k_pad - kpatch)))

    w_stem = jnp.pad(params["w_stem"],
                     ((0, k_pad - kpatch), (0, 0))).astype(jnp.bfloat16)
    b_stem = params["b_stem"]
    w_proj = params["w_proj"].astype(jnp.bfloat16)
    b_proj = params["b_proj"]

    kernel_a = functools.partial(_fused_stem_pool_proj_kernel,
                                 tile_s=tile_s, s_valid=S)

    flops_a = 2 * N * s_pad * k_pad * STEM_CH + 2 * N * STEM_CH * FEATURE_DIM
    bytes_a = (patches3d.size * 2 + w_stem.size * 2 + b_stem.size * 4
               + w_proj.size * 2 + b_proj.size * 4 + N * FEATURE_DIM * 4)

    feats = pl.pallas_call(
        kernel_a,
        out_shape=jax.ShapeDtypeStruct((N, 1, FEATURE_DIM), jnp.float32),
        grid_spec=pltpu.PrefetchScalarGridSpec(
            num_scalar_prefetch=0,
            grid=(N, num_s_tiles),
            in_specs=[
                pl.BlockSpec((1, tile_s, k_pad), lambda i, j: (i, j, 0)),
                pl.BlockSpec((k_pad, STEM_CH), lambda i, j: (0, 0)),
                pl.BlockSpec((1, STEM_CH), lambda i, j: (0, 0)),
                pl.BlockSpec((STEM_CH, FEATURE_DIM), lambda i, j: (0, 0)),
                pl.BlockSpec((1, FEATURE_DIM), lambda i, j: (0, 0)),
            ],
            out_specs=pl.BlockSpec((1, 1, FEATURE_DIM), lambda i, j: (i, 0, 0)),
            scratch_shapes=[pltpu.VMEM((1, STEM_CH), jnp.float32)],
        ),
        compiler_params=pltpu.CompilerParams(
            dimension_semantics=("parallel", "arbitrary"),
            vmem_limit_bytes=64 * 1024 * 1024),
        cost_estimate=pl.CostEstimate(flops=flops_a, transcendentals=0,
                                      bytes_accessed=bytes_a),
    )(patches3d, w_stem, b_stem, w_proj, b_proj)

    feats = feats.reshape(N, FEATURE_DIM)

    if not is_training:
        # TODO(synk): eval-mode path (no dropout, running-stat batchnorm) not wired up.
        return feats

    # Choose the widest feature tile that keeps the (N, tile_f) working set small:
    # fewer grid steps => less per-step overhead; lane dim stays a multiple of 128.
    tile_f = FEATURE_DIM
    while tile_f > 128 and N * tile_f * 4 * 6 > 8 * 1024 * 1024:
        tile_f //= 2
    num_f_tiles = FEATURE_DIM // tile_f

    seed_arr = jnp.array([seed], dtype=jnp.int32)

    flops_b = 20 * N * FEATURE_DIM
    bytes_b = 2 * N * FEATURE_DIM * 4 + 2 * FEATURE_DIM * 4 + 4

    out = pl.pallas_call(
        _dropout_bn_kernel,
        out_shape=jax.ShapeDtypeStruct((N, FEATURE_DIM), jnp.float32),
        grid_spec=pltpu.PrefetchScalarGridSpec(
            num_scalar_prefetch=1,
            grid=(num_f_tiles,),
            in_specs=[
                pl.BlockSpec((N, tile_f), lambda i, seed_ref: (0, i)),
                pl.BlockSpec((1, tile_f), lambda i, seed_ref: (0, i)),
                pl.BlockSpec((1, tile_f), lambda i, seed_ref: (0, i)),
            ],
            out_specs=pl.BlockSpec((N, tile_f), lambda i, seed_ref: (0, i)),
        ),
        compiler_params=pltpu.CompilerParams(
            dimension_semantics=("parallel",),
            vmem_limit_bytes=64 * 1024 * 1024),
        cost_estimate=pl.CostEstimate(flops=flops_b,
                                      transcendentals=FEATURE_DIM,
                                      bytes_accessed=bytes_b),
    )(seed_arr, feats, params["gamma"], params["beta"])
    return out


if __name__ == "__main__":
    key = jax.random.PRNGKey(0)
    k_img, k_par = jax.random.split(key)

    # small shapes: batch=2, 3 channels (RGB), 16x16 spatial
    images = jax.random.normal(k_img, (2, 3, 16, 16), jnp.float32)
    params = make_params(k_par, in_ch=3)

    out = inception_v3_embedding(images, params, seed=0, is_training=True)
    out = jax.block_until_ready(out)

    assert out.shape == (2, FEATURE_DIM) and out.dtype == jnp.float32
    assert bool(jnp.all(jnp.isfinite(out)))
    print("KERNEL_OK")
</pallas_src>

<mosaic_0001>
module attributes {stable_mosaic.version = 11 : i64} {
  func.func @_fused_stem_pool_proj_kernel(%arg0: i32, %arg1: i32, %arg2: memref<1x56x32xbf16, #tpu.memory_space<vmem>>, %arg3: memref<32x128xbf16, #tpu.memory_space<vmem>>, %arg4: memref<1x128xf32, #tpu.memory_space<vmem>>, %arg5: memref<128x2048xbf16, #tpu.memory_space<vmem>>, %arg6: memref<1x2048xf32, #tpu.memory_space<vmem>>, %arg7: memref<1x1x2048xf32, #tpu.memory_space<vmem>>, %arg8: memref<1x128xf32, #tpu.memory_space<vmem>>) attributes {dimension_semantics = [#tpu.dimension_semantics<parallel>, #tpu.dimension_semantics<arbitrary>], iteration_bounds = array<i64: 2, 1>, scalar_prefetch = 0 : i64, scratch_operands = 1 : i64, tpu.core_type = #tpu.core_type<tc>, window_params = [{transform_indices = @transform_0, window_bounds = array<i64: 1, 56, 32>}, {pipeline_mode = #tpu.pipeline_mode<synchronous>, transform_indices = @transform_1, window_bounds = array<i64: 32, 128>}, {pipeline_mode = #tpu.pipeline_mode<synchronous>, transform_indices = @transform_2, window_bounds = array<i64: 1, 128>}, {pipeline_mode = #tpu.pipeline_mode<synchronous>, transform_indices = @transform_3, window_bounds = array<i64: 128, 2048>}, {pipeline_mode = #tpu.pipeline_mode<synchronous>, transform_indices = @transform_4, window_bounds = array<i64: 1, 2048>}, {transform_indices = @transform_5, window_bounds = array<i64: 1, 1, 2048>}]} {
    %c0_i32 = arith.constant 0 : i32
    %0 = arith.cmpi eq, %arg1, %c0_i32 : i32
    %1 = arith.extui %0 : i1 to i32
    %c0_i32_0 = arith.constant 0 : i32
    %2 = arith.cmpi ne, %1, %c0_i32_0 : i32
    scf.if %2 {
      %cst_16 = arith.constant 0.000000e+00 : f32
      %30 = vector.broadcast %cst_16 : f32 to vector<1x128xf32>
      %c0_17 = arith.constant 0 : index
      %c0_18 = arith.constant 0 : index
      %31 = vector.load %arg8[%c0_17, %c0_18] : memref<1x128xf32, #tpu.memory_space<vmem>>, vector<1x128xf32>
      tpu.vector_store %arg8[%c0_17, %c0_18], %30 {strides = array<i32>} : memref<1x128xf32, #tpu.memory_space<vmem>>, vector<1x128xf32>,
    } else {
    }
    %c0 = arith.constant 0 : index
    %c0_1 = arith.constant 0 : index
    %c0_2 = arith.constant 0 : index
    %3 = vector.load %arg2[%c0, %c0_1, %c0_2] : memref<1x56x32xbf16, #tpu.memory_space<vmem>>, vector<1x56x32xbf16>
    %4 = vector.shape_cast %3 : vector<1x56x32xbf16> to vector<56x32xbf16>
    %c0_3 = arith.constant 0 : index
    %c0_4 = arith.constant 0 : index
    %5 = vector.load %arg3[%c0_3, %c0_4] : memref<32x128xbf16, #tpu.memory_space<vmem>>, vector<32x128xbf16>
    %cst = arith.constant dense<0.000000e+00> : vector<56x128xf32>
    %6 = tpu.matmul %4, %5, %cst {dimension_numbers = #tpu.dot_dimension_numbers<[1], [0], [0], [1], [0, 0, 1, 1], [], []>} : vector<56x32xbf16>, vector<32x128xbf16>, vector<56x128xf32> -> vector<56x128xf32>
    %c0_5 = arith.constant 0 : index
    %c0_6 = arith.constant 0 : index
    %7 = vector.load %arg4[%c0_5, %c0_6] : memref<1x128xf32, #tpu.memory_space<vmem>>, vector<1x128xf32>
    %8 = vector.broadcast %7 : vector<1x128xf32> to vector<56x128xf32>
    %9 = arith.addf %6, %8 : vector<56x128xf32>
    %cst_7 = arith.constant 0.000000e+00 : f32
    %10 = vector.broadcast %cst_7 : f32 to vector<56x128xf32>
    %11 = arith.maximumf %9, %10 : vector<56x128xf32>
    %c56_i32 = arith.constant 56 : i32
    %12 = arith.muli %arg1, %c56_i32 : i32
    %13 = tpu.iota {dimensions = array<i32: 0>} : vector<56x1xi32>
    %14 = vector.broadcast %12 : i32 to vector<56x1xi32>
    %15 = arith.addi %14, %13 : vector<56x1xi32>
    %c49_i32 = arith.constant 49 : i32
    %16 = vector.broadcast %c49_i32 : i32 to vector<56x1xi32>
    %17 = arith.cmpi slt, %15, %16 : vector<56x1xi32>
    %cst_8 = arith.constant 0.000000e+00 : f32
    %18 = vector.shape_cast %17 : vector<56x1xi1> to vector<56x1xi1>
    %19 = vector.broadcast %18 : vector<56x1xi1> to vector<56x128xi1>
    %20 = vector.broadcast %cst_8 : f32 to vector<56x128xf32>
    %21 = arith.select %19, %11, %20 : vector<56x128xi1>, vector<56x128xf32>
    %c0_9 = arith.constant 0 : index
    %c0_10 = arith.constant 0 : index
    %22 = vector.load %arg8[%c0_9, %c0_10] : memref<1x128xf32, #tpu.memory_space<vmem>>, vector<1x128xf32>
    %cst_11 = arith.constant dense<0.000000e+00> : vector<128xf32>
    %23 = vector.multi_reduction <add>, %21, %cst_11 [0] : vector<56x128xf32> to vector<128xf32>
    %24 = vector.shape_cast %23 : vector<128xf32> to vector<1x128xf32>
    %25 = arith.addf %22, %24 : vector<1x128xf32>
    %c0_12 = arith.constant 0 : index
    %c0_13 = arith.constant 0 : index
    %26 = vector.load %arg8[%c0_12, %c0_13] : memref<1x128xf32, #tpu.memory_space<vmem>>, vector<1x128xf32>
    tpu.vector_store %arg8[%c0_12, %c0_13], %25 {strides = array<i32>} : memref<1x128xf32, #tpu.memory_space<vmem>>, vector<1x128xf32>,
    %c0_i32_14 = arith.constant 0 : i32
    %27 = arith.cmpi eq, %arg1, %c0_i32_14 : i32
    %28 = arith.extui %27 : i1 to i32
    %c0_i32_15 = arith.constant 0 : i32
    %29 = arith.cmpi ne, %28, %c0_i32_15 : i32
    scf.if %29 {
      %c0_16 = arith.constant 0 : index
      %c0_17 = arith.constant 0 : index
      %30 = vector.load %arg8[%c0_16, %c0_17] : memref<1x128xf32, #tpu.memory_space<vmem>>, vector<1x128xf32>
      %cst_18 = arith.constant 0.0204081628 : f32
      %31 = vector.broadcast %cst_18 : f32 to vector<1x128xf32>
      %32 = arith.mulf %30, %31 : vector<1x128xf32>
      %33 = arith.truncf %32 : vector<1x128xf32> to vector<1x128xbf16>
      %c0_19 = arith.constant 0 : index
      %c0_20 = arith.constant 0 : index
      %34 = vector.load %arg5[%c0_19, %c0_20] : memref<128x2048xbf16, #tpu.memory_space<vmem>>, vector<128x2048xbf16>
      %cst_21 = arith.constant dense<0.000000e+00> : vector<1x2048xf32>
      %35 = tpu.matmul %33, %34, %cst_21 {dimension_numbers = #tpu.dot_dimension_numbers<[1], [0], [0], [1], [0, 0, 1, 1], [], []>} : vector<1x128xbf16>, vector<128x2048xbf16>, vector<1x2048xf32> -> vector<1x2048xf32>
      %c0_22 = arith.constant 0 : index
      %c0_23 = arith.constant 0 : index
      %36 = vector.load %arg6[%c0_22, %c0_23] : memref<1x2048xf32, #tpu.memory_space<vmem>>, vector<1x2048xf32>
      %37 = arith.addf %35, %36 : vector<1x2048xf32>
      %c0_24 = arith.constant 0 : index
      %c0_25 = arith.constant 0 : index
      %c0_26 = arith.constant 0 : index
      %38 = vector.load %arg7[%c0_24, %c0_25, %c0_26] : memref<1x1x2048xf32, #tpu.memory_space<vmem>>, vector<1x1x2048xf32>
      %39 = vector.shape_cast %38 : vector<1x1x2048xf32> to vector<1x2048xf32>
      %40 = vector.shape_cast %37 : vector<1x2048xf32> to vector<1x1x2048xf32>
      tpu.vector_store %arg7[%c0_24, %c0_25, %c0_26], %40 {strides = array<i32>} : memref<1x1x2048xf32, #tpu.memory_space<vmem>>, vector<1x1x2048xf32>,
    } else {
    }
    return
  }
  func.func @transform_0(%arg0: i32, %arg1: i32) -> (i32, i32, i32) {
    %c0_i32 = arith.constant 0 : i32
    %c0_i32_0 = arith.constant 0 : i32
    return %arg0, %arg1, %c0_i32 : i32, i32, i32
  }
  func.func @transform_1(%arg0: i32, %arg1: i32) -> (i32, i32) {
    %c0_i32 = arith.constant 0 : i32
    %c0_i32_0 = arith.constant 0 : i32
    %c0_i32_1 = arith.constant 0 : i32
    return %c0_i32, %c0_i32_0 : i32, i32
  }
  func.func @transform_2(%arg0: i32, %arg1: i32) -> (i32, i32) {
    %c0_i32 = arith.constant 0 : i32
    %c0_i32_0 = arith.constant 0 : i32
    %c0_i32_1 = arith.constant 0 : i32
    return %c0_i32, %c0_i32_0 : i32, i32
  }
  func.func @transform_3(%arg0: i32, %arg1: i32) -> (i32, i32) {
    %c0_i32 = arith.constant 0 : i32
    %c0_i32_0 = arith.constant 0 : i32
    %c0_i32_1 = arith.constant 0 : i32
    return %c0_i32, %c0_i32_0 : i32, i32
  }
  func.func @transform_4(%arg0: i32, %arg1: i32) -> (i32, i32) {
    %c0_i32 = arith.constant 0 : i32
    %c0_i32_0 = arith.constant 0 : i32
    %c0_i32_1 = arith.constant 0 : i32
    return %c0_i32, %c0_i32_0 : i32, i32
  }
  func.func @transform_5(%arg0: i32, %arg1: i32) -> (i32, i32, i32) {
    %c0_i32 = arith.constant 0 : i32
    %c0_i32_0 = arith.constant 0 : i32
    %c0_i32_1 = arith.constant 0 : i32
    return %arg0, %c0_i32, %c0_i32_0 : i32, i32, i32
  }
}

</mosaic_0001>

<llo_original>
// kernel: tpu_custom_call.1
$region0: #{tpu_custom_call.1}
  #allocation0 [shape = 'u32[]', space=smem, size = 0x4, offset = 0x4, fixed_abs, tag = 'smem constant byte address 0x4 - core index']
  #allocation1 [shape = 'u32[144,128]{1,0:T(1,128)}', space=vmem, size = 0x12000, scoped, tag = 'internal scratch']
  #allocation2 [shape = 'f32[1,128]{1,0:T(1,128)}', space=vmem, size = 0x200, scoped, tag = 'scratch operand']
  %s0 = inlined_call_operand.hbm [shape: bf16[2,56,32], index: 0, kind: input, shape index: {}]
  %s1 = inlined_call_operand.hbm [shape: bf16[32,128], index: 1, kind: input, shape index: {}]
  %s2 = inlined_call_operand.hbm [shape: f32[1,128], index: 2, kind: input, shape index: {}]
  %s3 = inlined_call_operand.hbm [shape: bf16[128,2048], index: 3, kind: input, shape index: {}]
  %s4 = inlined_call_operand.hbm [shape: f32[1,2048], index: 4, kind: input, shape index: {}]
  %s5 = inlined_call_operand.hbm [shape: f32[2,1,2048], index: 5, kind: output, shape index: {}]
  %s6 = sld [smem:[#allocation0]]
  $region81: #{tpu_custom_call.1} parent=0
    _
  %s8 = ssub.s32 1, %s6
  %s9 = scalar_select 0, %s8, %s6
  $region1: #{tpu_custom_call.1} parent=0
    #allocation3 [shape = 'u8[28672]{0}', space=vmem, size = 0x7000, scoped, tag = 'input window, operand 0']
    #allocation4 [shape = 's32[2]{0}', space=sflag, size = 0x8, scoped, tag = 'scoped memory for tpu_custom_call.1']
    #allocation5 [shape = 's32[2]{0}', space=sflag, size = 0x8, scoped, tag = 'scoped memory for tpu_custom_call.1']
    #allocation6 [shape = 'u8[8192]{0}', space=vmem, size = 0x2000, scoped, tag = 'input window, operand 1, single buffered']
    #allocation7 [shape = 's32[1]{0}', space=sflag, size = 0x4, scoped, tag = 'scoped memory for tpu_custom_call.1']
    #allocation8 [shape = 'u8[512]{0}', space=vmem, size = 0x400, scoped, tag = 'input window, operand 2, single buffered']
    #allocation9 [shape = 'u8[524288]{0}', space=vmem, size = 0x80000, scoped, tag = 'input window, operand 3, single buffered']
    #allocation10 [shape = 's32[1]{0}', space=sflag, size = 0x4, scoped, tag = 'scoped memory for tpu_custom_call.1']
    #allocation11 [shape = 'u8[8192]{0}', space=vmem, size = 0x2000, scoped, tag = 'input window, operand 4, single buffered']
    #allocation12 [shape = 'u8[16384]{0}', space=vmem, size = 0x4000, scoped, tag = 'output window, operand 0']
    %10 = vsyncpa [#allocation4], 0
    %s11 = scalar_lea.sflag [#allocation4], 1
    %12 = vsyncpa %s11, 0
    %13 = vsyncpa [#allocation7], 0
    %14 = vsyncpa [#allocation10], 0
    %15 = vsyncpa [#allocation5], 0
    %s16 = scalar_lea.sflag [#allocation5], 1
    %17 = vsyncpa %s16, 0
    loop: start=0, step=1, limit=4
    $region2: #{tpu_custom_call.1} parent=1 // loop_pre_header
      _
    $region3: #{tpu_custom_call.1} parent=1 // loop_header
      %s19 = sphi 0, %s23
      %p20 = scmp.ge.s32.totalorder %s19, 4
      %s26 = sphi 0, %s38
      %s27 = sphi 0, %s34
      %s28 = sphi 0, %s26
      %s29 = sphi 0, %s27
      %s30 = sphi 0, %s28
      %s31 = sphi 0, %s29
      %s43 = sphi 0, %s45
      %s46 = sphi 0, %s43
      %s47 = sphi 0, %s46
      %s63 = sphi 0, %s47
      %s67 = sphi 0, %s67
      %s69 = sphi 0, %s67
      %s70 = sphi 0, %s69
      %s84 = sphi 0, %s70
      %s88 = sphi 0, %s88
      %s90 = sphi 0, %s88
      %s91 = sphi 0, %s90
      %s105 = sphi 0, %s91
      %s109 = sphi 0, %s109
      %s111 = sphi 0, %s109
      %s112 = sphi 0, %s111
      %s126 = sphi 0, %s112
      %s130 = sphi 0, %s130
      %s132 = sphi 0, %s130
      %s133 = sphi 0, %s132
      %s147 = sphi 0, %s133
      %s153 = sphi 0, %s155
      %s156 = sphi 0, %s153
      %s157 = sphi 0, %s156
      %s173 = sphi 0, %s157
    $region4: #{tpu_custom_call.1} parent=1 // loop_header_branch
      %22 = sbr.rel (%p20) target = $region8
    $region5: #{tpu_custom_call.1} parent=1 // loop_body
      %s24 = ssub.s32 %s19, 1
      %s25 = ssub.s32 %s19, 2
      %s32 = sadd.s32 1, %s27
      %p33 = scmp.ge.s32.totalorder %s32, 1
      %s34 = scalar_select %p33, 0, %s32
      %s35 = sadd.s32 1, %s26
      %s36 = scalar_select %p33, %s35, %s26
      %p37 = scmp.ge.s32.totalorder %s36, 2
      %s38 = scalar_select %p37, 0, %s36
      %s39 = ssub.s32 %s26, %s38
      %s40 = ssub.s32 %s27, %s34
      %s41 = sor.u32 %s39, %s40
      %p42 = scmp.eq.s32.totalorder %s41, 0
      %s44 = sadd.s32 %s43, 1
      %s45 = scalar_select %p42, %s43, %s44
      %p48 = pneg %p42
      %p49 = scmp.eq.s32.totalorder %s19, 1
      %p50 = por %p48, %p49
      %p51 = scmp.ne.s32.totalorder %s43, %s46
      %p52 = scmp.eq.s32.totalorder %s19, 0
      %p53 = por %p51, %p52
      %p54 = scmp.ne.s32.totalorder %s43, %s46
      %p55 = scmp.eq.s32.totalorder %s24, 1
      %p56 = por %p54, %p55
      %p57 = scmp.ne.s32.totalorder %s46, %s47
      %p58 = scmp.eq.s32.totalorder %s24, 0
      %p59 = por %p57, %p58
      %p60 = scmp.ne.s32.totalorder %s46, %s47
      %p61 = scmp.eq.s32.totalorder %s25, 1
      %p62 = por %p60, %p61
      %p64 = scmp.ne.s32.totalorder %s47, %s63
      %p65 = scmp.eq.s32.totalorder %s25, 0
      %p66 = por %p64, %p65
      %s68 = sadd.s32 %s67, 1
      %p71 = scmp.eq.s32.totalorder %s19, 1
      %p72 = scmp.ne.s32.totalorder %s67, %s69
      %p73 = scmp.eq.s32.totalorder %s19, 0
      %p74 = por %p72, %p73
      %p75 = scmp.ne.s32.totalorder %s67, %s69
      %p76 = scmp.eq.s32.totalorder %s24, 1
      %p77 = por %p75, %p76
      %p78 = scmp.ne.s32.totalorder %s69, %s70
      %p79 = scmp.eq.s32.totalorder %s24, 0
      %p80 = por %p78, %p79
      %p81 = scmp.ne.s32.totalorder %s69, %s70
      %p82 = scmp.eq.s32.totalorder %s25, 1
      %p83 = por %p81, %p82
      %p85 = scmp.ne.s32.totalorder %s70, %s84
      %p86 = scmp.eq.s32.totalorder %s25, 0
      %p87 = por %p85, %p86
      %s89 = sadd.s32 %s88, 1
      %p92 = scmp.eq.s32.totalorder %s19, 1
      %p93 = scmp.ne.s32.totalorder %s88, %s90
      %p94 = scmp.eq.s32.totalorder %s19, 0
      %p95 = por %p93, %p94
      %p96 = scmp.ne.s32.totalorder %s88, %s90
      %p97 = scmp.eq.s32.totalorder %s24, 1
      %p98 = por %p96, %p97
      %p99 = scmp.ne.s32.totalorder %s90, %s91
      %p100 = scmp.eq.s32.totalorder %s24, 0
      %p101 = por %p99, %p100
      %p102 = scmp.ne.s32.totalorder %s90, %s91
      %p103 = scmp.eq.s32.totalorder %s25, 1
      %p104 = por %p102, %p103
      %p106 = scmp.ne.s32.totalorder %s91, %s105
      %p107 = scmp.eq.s32.totalorder %s25, 0
      %p108 = por %p106, %p107
      %s110 = sadd.s32 %s109, 1
      %p113 = scmp.eq.s32.totalorder %s19, 1
      %p114 = scmp.ne.s32.totalorder %s109, %s111
      %p115 = scmp.eq.s32.totalorder %s19, 0
      %p116 = por %p114, %p115
      %p117 = scmp.ne.s32.totalorder %s109, %s111
      %p118 = scmp.eq.s32.totalorder %s24, 1
      %p119 = por %p117, %p118
      %p120 = scmp.ne.s32.totalorder %s111, %s112
      %p121 = scmp.eq.s32.totalorder %s24, 0
      %p122 = por %p120, %p121
      %p123 = scmp.ne.s32.totalorder %s111, %s112
      %p124 = scmp.eq.s32.totalorder %s25, 1
      %p125 = por %p123, %p124
      %p127 = scmp.ne.s32.totalorder %s112, %s126
      %p128 = scmp.eq.s32.totalorder %s25, 0
      %p129 = por %p127, %p128
      %s131 = sadd.s32 %s130, 1
      %p134 = scmp.eq.s32.totalorder %s19, 1
      %p135 = scmp.ne.s32.totalorder %s130, %s132
      %p136 = scmp.eq.s32.totalorder %s19, 0
      %p137 = por %p135, %p136
      %p138 = scmp.ne.s32.totalorder %s130, %s132
      %p139 = scmp.eq.s32.totalorder %s24, 1
      %p140 = por %p138, %p139
      %p141 = scmp.ne.s32.totalorder %s132, %s133
      %p142 = scmp.eq.s32.totalorder %s24, 0
      %p143 = por %p141, %p142
      %p144 = scmp.ne.s32.totalorder %s132, %s133
      %p145 = scmp.eq.s32.totalorder %s25, 1
      %p146 = por %p144, %p145
      %p148 = scmp.ne.s32.totalorder %s133, %s147
      %p149 = scmp.eq.s32.totalorder %s25, 0
      %p150 = por %p148, %p149
      %s151 = ssub.s32 %s26, %s38
      %p152 = scmp.eq.s32.totalorder %s151, 0
      %s154 = sadd.s32 %s153, 1
      %s155 = scalar_select %p152, %s153, %s154
      %p158 = pneg %p152
      %p159 = scmp.eq.s32.totalorder %s19, 1
      %p160 = por %p158, %p159
      %p161 = scmp.ne.s32.totalorder %s153, %s156
      %p162 = scmp.eq.s32.totalorder %s19, 0
      %p163 = por %p161, %p162
      %p164 = scmp.ne.s32.totalorder %s153, %s156
      %p165 = scmp.eq.s32.totalorder %s24, 1
      %p166 = por %p164, %p165
      %p167 = scmp.ne.s32.totalorder %s156, %s157
      %p168 = scmp.eq.s32.totalorder %s24, 0
      %p169 = por %p167, %p168
      %p170 = scmp.ne.s32.totalorder %s156, %s157
      %p171 = scmp.eq.s32.totalorder %s25, 1
      %p172 = por %p170, %p171
      %p174 = scmp.ne.s32.totalorder %s157, %s173
      %p175 = scmp.eq.s32.totalorder %s25, 0
      %p176 = por %p174, %p175
      %p177 = scmp.le.s32.totalorder 1, %s19
      %p178 = scmp.lt.s32.totalorder %s19, 3
      %p179 = pnand %p177, %p178
      %p180 = pneg %p179
      // Predicated region
      $region9: #{tpu_custom_call.1} parent=5 // pred_check
        _
      $region10: #{tpu_custom_call.1} parent=5 // pred_check_branch
        %182 = sbr.rel (%p179) target = $region12
      $region11: #{tpu_custom_call.1} parent=5 // pred_region
        %s183 = ssub.s32 %s19, 1
        // Predicated region
        $region13: #{tpu_custom_call.1} parent=11 // pred_check
          %p184 = pneg %p80
        $region14: #{tpu_custom_call.1} parent=11 // pred_check_branch
          %186 = sbr.rel (%p184) target = $region16
        $region15: #{tpu_custom_call.1} parent=11 // pred_region
          %s188 = ssub.s32 256, 256
          %189 = vsyncadd [#allocation7], %s188
          %s190 = sshll.u32 [#allocation6], 4
          %s191 = int_to_ptr.vmem [resolvable:$true] %s190
          %196 = dma.hbm_to_vmem [thread:$0]  %s1, 256, %s191, [#allocation7], 64, 64, 4
        $region16: #{tpu_custom_call.1} parent=11 // pred_fallthru
          _
        // Predicated region
        $region17: #{tpu_custom_call.1} parent=11 // pred_check
          %p197 = pneg %p101
        $region18: #{tpu_custom_call.1} parent=11 // pred_check_branch
          %199 = sbr.rel (%p197) target = $region20
        $region19: #{tpu_custom_call.1} parent=11 // pred_region
          %s201 = ssub.s32 16, 16
          %202 = vsyncadd [#allocation7], %s201
          %s204 = sshll.u32 [#allocation8], 4
          %s205 = int_to_ptr.vmem [resolvable:$true] %s204
          %207 = dma.hbm_to_vmem [thread:$0]  %s2, 16, %s205, [#allocation7]
        $region20: #{tpu_custom_call.1} parent=11 // pred_fallthru
          _
        // Predicated region
        $region21: #{tpu_custom_call.1} parent=11 // pred_check
          %p208 = pneg %p122
        $region22: #{tpu_custom_call.1} parent=11 // pred_check_branch
          %210 = sbr.rel (%p208) target = $region24
        $region23: #{tpu_custom_call.1} parent=11 // pred_region
          %s212 = ssub.s32 16384, 16384
          %213 = vsyncadd [#allocation10], %s212
          %s214 = sshll.u32 [#allocation9], 4
          %s215 = int_to_ptr.vmem [resolvable:$true] %s214
          %220 = dma.hbm_to_vmem [thread:$0]  %s3, 16384, %s215, [#allocation10], 1024, 1024, 64
        $region24: #{tpu_custom_call.1} parent=11 // pred_fallthru
          _
        // Predicated region
        $region25: #{tpu_custom_call.1} parent=11 // pred_check
          %p221 = pneg %p143
        $region26: #{tpu_custom_call.1} parent=11 // pred_check_branch
          %223 = sbr.rel (%p221) target = $region28
        $region27: #{tpu_custom_call.1} parent=11 // pred_region
          %s225 = ssub.s32 256, 256
          %226 = vsyncadd [#allocation10], %s225
          %s228 = sshll.u32 [#allocation11], 4
          %s229 = int_to_ptr.vmem [resolvable:$true] %s228
          %231 = dma.hbm_to_vmem [thread:$0]  %s4, 256, %s229, [#allocation10]
        $region28: #{tpu_custom_call.1} parent=11 // pred_fallthru
          _
      $region12: #{tpu_custom_call.1} parent=5 // pred_fallthru
        _
      %p232 = scmp.lt.s32.totalorder %s19, 2
      // Predicated region
      $region29: #{tpu_custom_call.1} parent=5 // pred_check
        %p233 = pneg %p232
      $region30: #{tpu_custom_call.1} parent=5 // pred_check_branch
        %235 = sbr.rel (%p233) target = $region32
      $region31: #{tpu_custom_call.1} parent=5 // pred_region
        // Predicated region
        $region33: #{tpu_custom_call.1} parent=31 // pred_check
          %p236 = pneg %p53
        $region34: #{tpu_custom_call.1} parent=31 // pred_check_branch
          %238 = sbr.rel (%p236) target = $region36
        $region35: #{tpu_custom_call.1} parent=31 // pred_region
          %s239 = sand.u32 %s43, 1
          %s240 = scalar_lea.sflag [#allocation4], %s239
          %s241 = sand.u32 %s43, 1
          %s242 = smul.addr %s241, 28
          %s243 = scalar_lea.vmem [#allocation3], %s242
          %s244 = smul.u32 7, %s27
          %s246 = ssub.s32 448, 448
          %247 = vsyncadd %s240, %s246
          %s248 = smul.addr %s26, 7
          %s249 = sadd.s32 %s244, %s248
          %s250 = smul.addr %s249, 64
          %s251 = scalar_lea.hbm %s0, %s250
          %s252 = sshll.u32 %s243, 4
          %s253 = int_to_ptr.vmem [resolvable:$true] %s252
          %258 = dma.hbm_to_vmem [thread:$0]  %s251, 448, %s253, %s240, 64, 64, 4
        $region36: #{tpu_custom_call.1} parent=31 // pred_fallthru
          _
      $region32: #{tpu_custom_call.1} parent=5 // pred_fallthru
        _
      %p259 = scmp.le.s32.totalorder 1, %s19
      %p260 = scmp.lt.s32.totalorder %s19, 3
      %p261 = pnand %p259, %p260
      %p262 = pneg %p261
      // Predicated region
      $region37: #{tpu_custom_call.1} parent=5 // pred_check
        _
      $region38: #{tpu_custom_call.1} parent=5 // pred_check_branch
        %264 = sbr.rel (%p261) target = $region40
      $region39: #{tpu_custom_call.1} parent=5 // pred_region
        %s265 = ssub.s32 %s19, 1
        %s266 = sand.u32 %s46, 1
        %s267 = scalar_lea.sflag [#allocation4], %s266
        %s268 = sand.u32 %s46, 1
        %s269 = smul.addr %s268, 28
        %s270 = scalar_lea.vmem [#allocation3], %s269
        // Predicated region
        $region41: #{tpu_custom_call.1} parent=39 // pred_check
          %p271 = pneg %p59
        $region42: #{tpu_custom_call.1} parent=39 // pred_check_branch
          %273 = sbr.rel (%p271) target = $region44
        $region43: #{tpu_custom_call.1} parent=39 // pred_region
          %274 = dma.done %s267, 448
        $region44: #{tpu_custom_call.1} parent=39 // pred_fallthru
          _
        // Predicated region
        $region45: #{tpu_custom_call.1} parent=39 // pred_check
          %p275 = pneg %p80
        $region46: #{tpu_custom_call.1} parent=39 // pred_check_branch
          %277 = sbr.rel (%p275) target = $region48
        $region47: #{tpu_custom_call.1} parent=39 // pred_region
          %278 = dma.done [#allocation7], 256
        $region48: #{tpu_custom_call.1} parent=39 // pred_fallthru
          _
        // Predicated region
        $region49: #{tpu_custom_call.1} parent=39 // pred_check
          %p279 = pneg %p101
        $region50: #{tpu_custom_call.1} parent=39 // pred_check_branch
          %281 = sbr.rel (%p279) target = $region52
        $region51: #{tpu_custom_call.1} parent=39 // pred_region
          %282 = dma.done [#allocation7], 16
        $region52: #{tpu_custom_call.1} parent=39 // pred_fallthru
          _
        // Predicated region
        $region53: #{tpu_custom_call.1} parent=39 // pred_check
          %p283 = pneg %p122
        $region54: #{tpu_custom_call.1} parent=39 // pred_check_branch
          %285 = sbr.rel (%p283) target = $region56
        $region55: #{tpu_custom_call.1} parent=39 // pred_region
          %286 = dma.done [#allocation10], 16384
        $region56: #{tpu_custom_call.1} parent=39 // pred_fallthru
          _
        // Predicated region
        $region57: #{tpu_custom_call.1} parent=39 // pred_check
          %p287 = pneg %p143
        $region58: #{tpu_custom_call.1} parent=39 // pred_check_branch
          %289 = sbr.rel (%p287) target = $region60
        $region59: #{tpu_custom_call.1} parent=39 // pred_region
          %290 = dma.done [#allocation10], 256
        $region60: #{tpu_custom_call.1} parent=39 // pred_fallthru
          _
        %s291 = sand.u32 %s46, 1
        %s292 = scalar_lea.sflag [#allocation4], %s291
        %s293 = sand.u32 %s46, 1
        %s294 = smul.addr %s293, 28
        %s295 = scalar_lea.vmem [#allocation3], %s294
        %p296 = pneg %p59
        %p297 = pneg %p56
        %p298 = pneg %p80
        %p299 = pneg %p77
        %p300 = pneg %p101
        %p301 = pneg %p98
        %p302 = pneg %p122
        %p303 = pneg %p119
        %p304 = pneg %p143
        %p305 = pneg %p140
        %p306 = pneg %p169
        %p307 = pneg %p166
        %s308 = sand.u32 %s156, 1
        %s309 = scalar_lea.sflag [#allocation5], %s308
        %s310 = sand.u32 %s156, 1
        %s311 = smul.addr %s310, 16
        %s312 = scalar_lea.vmem [#allocation12], %s311
        %s313 = smul.u32 7, %s29
        %p315 = scmp.eq.s32.totalorder %s29, 0
        // Predicated region
        $region61: #{tpu_custom_call.1} parent=39 // pred_check
          %p316 = pneg %p315
        $region62: #{tpu_custom_call.1} parent=39 // pred_check_branch
          %318 = sbr.rel (%p316) target = $region64
        $region63: #{tpu_custom_call.1} parent=39 // pred_region
          %319 = vst [vmem:[#allocation2] sm:$0x1] 0.0
        $region64: #{tpu_custom_call.1} parent=39 // pred_fallthru
          _
        %v320 = vld [vmem:[%s270] sm:$0xf]
        %v321 = vld [vmem:[%s270 + $0x4] sm:$0xf]
        %v322 = vld [vmem:[%s270 + $0x8] sm:$0xf]
        %v323 = vld [vmem:[%s270 + $0xc] sm:$0xf]
        %v324 = vld [vmem:[%s270 + $0x10] sm:$0xf]
        %v325 = vld [vmem:[%s270 + $0x14] sm:$0xf]
        %v326 = vld [vmem:[%s270 + $0x18] sm:$0xf]
        %v327 = vld [vmem:[#allocation6] sm:$0xf]
        %v328 = vld [vmem:[#allocation6 + $0x4] sm:$0xf]
        %v329 = vld [vmem:[#allocation6 + $0x8] sm:$0xf]
        %v330 = vld [vmem:[#allocation6 + $0xc] sm:$0xf]
        %v331 = vld [vmem:[#allocation8] sm:$0x1]
        %v333 = vlaneseq
        %v334 = vshrl.u32 %v333, 7
        %v335 = vsub.s32 0, %v334
        %v336 = vrot.slane %v331, %v335
        %v345 = vunpack.c.l.b16 %v320
        %v346 = vunpack.c.l.b16 %v321
        %v347 = vunpack.c.l.b16 %v322
        %v348 = vunpack.c.l.b16 %v323
        %v349 = vunpack.c.l.b16 %v324
        %v350 = vunpack.c.l.b16 %v325
        %v351 = vunpack.c.l.b16 %v326
        %v352 = vpack.c.b16 %v346, %v345
        %v353 = vpack.c.b16 %v348, %v347
        %v354 = vpack.c.b16 %v350, %v349
        %v355 = vpack.c.b16 %v351, %v351
        %v360 = vunpack.c.l.b16 %v327
        %v361 = vunpack.c.l.b16 %v328
        %v362 = vunpack.c.l.b16 %v329
        %v363 = vunpack.c.l.b16 %v330
        %v364 = vpack.c.b16 %v361, %v360
        %v365 = vpack.c.b16 %v363, %v362
        %vm368 = vcmask 261120
        %v370 = vsel %vm368, %v352, 0
        %v373 = vsel %vm368, %v353, 0
        %v376 = vsel %vm368, %v354, 0
        %v379 = vsel %vm368, %v355, 0
        %381 = vmatprep.subr.bf16.mxu0 0
        %382 = vmatpush1.bf16.msra.mxu0 %v364
        %383 = vmatprep.subr.bf16.mxu0 0
        %384 = vmatpush1.bf16.msra.mxu0 %v365
        %385 = vmatprep.subr.bf16.mxu0 0
        %386 = vmatpush1.bf16.msra.mxu0 0
        %387 = vmatprep.subr.bf16.mxu0 0
        %388 = vmatpush1.bf16.msra.mxu0 0
        %389 = vmatprep.subr.bf16.mxu0 0
        %390 = vmatpush1.bf16.msra.mxu0 0
        %391 = vmatprep.subr.bf16.mxu0 0
        %392 = vmatpush1.bf16.msra.mxu0 0
        %393 = vmatprep.subr.bf16.mxu0 0
        %394 = vmatpush1.bf16.msra.mxu0 0
        %395 = vmatprep.subr.bf16.mxu0 0
        %396 = vmatpush1.bf16.msra.mxu0 0
        %397 = vmatprep.subr.bf16.mxu0 0
        %398 = vmatpush1.bf16.msra.mxu0 0
        %399 = vmatprep.subr.bf16.mxu0 0
        %400 = vmatpush1.bf16.msra.mxu0 0
        %401 = vmatprep.subr.bf16.mxu0 0
        %402 = vmatpush1.bf16.msra.mxu0 0
        %403 = vmatprep.subr.bf16.mxu0 0
        %404 = vmatpush1.bf16.msra.mxu0 0
        %405 = vmatprep.subr.bf16.mxu0 0
        %406 = vmatpush1.bf16.msra.mxu0 0
        %407 = vmatprep.subr.bf16.mxu0 0
        %408 = vmatpush1.bf16.msra.mxu0 0
        %409 = vmatprep.subr.bf16.mxu0 0
        %410 = vmatpush1.bf16.msra.mxu0 0
        %411 = vmatprep.subr.bf16.mxu0 0
        %412 = vmatpush1.bf16.msra.mxu0 0
        %413 = vmatprep.mubr.bf16.mxu0 0
        %414 = vmatmul.mubr.bf16.gmra.mrb[0].mxu0 %v370
        %v415 = vpop.f32.mrb[0].mxu0
        %v416 = vadd.f32 %v336, %v415
        %v417 = vpop.f32.mrb[0].mxu0
        %v418 = vpop.f32.mrb[0].mxu0
        %v419 = vadd.f32 %v336, %v418
        %v420 = vpop.f32.mrb[0].mxu0
        %421 = vmatprep.mubr.bf16.mxu0 0
        %422 = vmatmul.mubr.bf16.gmra.mrb[0].mxu0 %v373
        %v423 = vpop.f32.mrb[0].mxu0
        %v424 = vadd.f32 %v336, %v423
        %v425 = vpop.f32.mrb[0].mxu0
        %v426 = vpop.f32.mrb[0].mxu0
        %v427 = vadd.f32 %v336, %v426
        %v428 = vpop.f32.mrb[0].mxu0
        %429 = vmatprep.mubr.bf16.mxu0 0
        %430 = vmatmul.mubr.bf16.gmra.mrb[0].mxu0 %v376
        %v431 = vpop.f32.mrb[0].mxu0
        %v432 = vadd.f32 %v336, %v431
        %v433 = vpop.f32.mrb[0].mxu0
        %v434 = vpop.f32.mrb[0].mxu0
        %v435 = vadd.f32 %v336, %v434
        %v436 = vpop.f32.mrb[0].mxu0
        %437 = vmatprep.mubr.bf16.mxu0 0
        %438 = vmatmul.mubr.bf16.gmra.mrb[0].mxu0 %v379
        %v439 = vpop.f32.mrb[0].mxu0
        %v440 = vadd.f32 %v336, %v439
        %v441 = vpop.f32.mrb[0].mxu0
        %v442 = vpop.f32.mrb[0].mxu0
        %v443 = vpop.f32.mrb[0].mxu0
        %444 = vdwg.mxu0
        %v445 = vmax.f32 %v416, 0.0
        %v446 = vmax.f32 %v419, 0.0
        %v447 = vmax.f32 %v424, 0.0
        %v448 = vmax.f32 %v427, 0.0
        %v449 = vmax.f32 %v432, 0.0
        %v450 = vmax.f32 %v435, 0.0
        %v451 = vmax.f32 %v440, 0.0
        %s452 = smul.u32 %s29, 56
        %v453 = vlaneseq
        %v454 = vshrl.u32 %v453, 7
        %v455 = vadd.s32 %v454, 8
        %v456 = vadd.s32 %v454, 16
        %v457 = vadd.s32 %v454, 24
        %v458 = vadd.s32 %v454, 32
        %v459 = vadd.s32 %v454, 40
        %v460 = vadd.s32 %v454, 48
        %v461 = vstv %s452
        %v462 = vadd.s32 %v461, %v454
        %v463 = vadd.s32 %v461, %v455
        %v464 = vadd.s32 %v461, %v456
        %v465 = vadd.s32 %v461, %v457
        %v466 = vadd.s32 %v461, %v458
        %v467 = vadd.s32 %v461, %v459
        %v468 = vadd.s32 %v461, %v460
        %vm469 = vcmp.lt.s32.totalorder %v462, 49
        %vm470 = vcmp.lt.s32.totalorder %v463, 49
        %vm471 = vcmp.lt.s32.totalorder %v464, 49
        %vm472 = vcmp.lt.s32.totalorder %v465, 49
        %vm473 = vcmp.lt.s32.totalorder %v466, 49
        %vm474 = vcmp.lt.s32.totalorder %v467, 49
        %vm475 = vcmp.lt.s32.totalorder %v468, 49
        %v476 = vsel %vm469, 1, 0
        %v477 = vsel %vm470, 1, 0
        %v478 = vsel %vm471, 1, 0
        %v479 = vsel %vm472, 1, 0
        %v480 = vsel %vm473, 1, 0
        %v481 = vsel %vm474, 1, 0
        %v482 = vsel %vm475, 1, 0
        %vm483 = vcmp.eq.s32.totalorder %v476, 1
        %vm484 = vcmp.eq.s32.totalorder %v477, 1
        %vm485 = vcmp.eq.s32.totalorder %v478, 1
        %vm486 = vcmp.eq.s32.totalorder %v479, 1
        %vm487 = vcmp.eq.s32.totalorder %v480, 1
        %vm488 = vcmp.eq.s32.totalorder %v481, 1
        %vm489 = vcmp.eq.s32.totalorder %v482, 1
        %v490 = vsel %vm483, %v445, 0.0
        %v491 = vsel %vm484, %v446, 0.0
        %v492 = vsel %vm485, %v447, 0.0
        %v493 = vsel %vm486, %v448, 0.0
        %v494 = vsel %vm487, %v449, 0.0
        %v495 = vsel %vm488, %v450, 0.0
        %v496 = vsel %vm489, %v451, 0.0
        %v497 = vld [vmem:[#allocation2] sm:$0x1]
        %v498 = vadd.f32 %v490, %v491
        %v499 = vadd.f32 %v498, %v492
        %v500 = vadd.f32 %v499, %v493
        %v501 = vadd.f32 %v500, %v494
        %v502 = vadd.f32 %v501, %v495
        %v503 = vadd.f32 %v502, %v496
        %v504 = vrot.slane %v503, 4
        %v505 = vadd.f32 %v503, %v504
        %v506 = vrot.slane %v505, 2
        %v507 = vadd.f32 %v505, %v506
        %v508 = vrot.slane %v507, 1
        %v509 = vadd.f32 %v507, %v508
        %v510 = vadd.f32 %v497, %v509
        %511 = vst [vmem:[#allocation2] sm:$0x1] %v510
        // Predicated region
        $region65: #{tpu_custom_call.1} parent=39 // pred_check
          %p512 = pneg %p315
        $region66: #{tpu_custom_call.1} parent=39 // pred_check_branch
          %514 = sbr.rel (%p512) target = $region68
        $region67: #{tpu_custom_call.1} parent=39 // pred_region
          %v515 = vld [vmem:[#allocation2] sm:$0x1]
          %v516 = vmul.f32 %v515, 0.020408163
          %v517 = vpack.c.bf16 %v516, %v516
          %v518 = vld [vmem:[#allocation9] sm:$0xff]
          %v519 = vld [vmem:[#allocation9 + $0x8] sm:$0xff]
          %v520 = vld [vmem:[#allocation9 + $0x10] sm:$0xff]
          %v521 = vld [vmem:[#allocation9 + $0x18] sm:$0xff]
          %v522 = vld [vmem:[#allocation9 + $0x20] sm:$0xff]
          %v523 = vld [vmem:[#allocation9 + $0x28] sm:$0xff]
          %v524 = vld [vmem:[#allocation9 + $0x30] sm:$0xff]
          %v525 = vld [vmem:[#allocation9 + $0x38] sm:$0xff]
          %v526 = vld [vmem:[#allocation9 + $0x40] sm:$0xff]
          %v527 = vld [vmem:[#allocation9 + $0x48] sm:$0xff]
          %v528 = vld [vmem:[#allocation9 + $0x50] sm:$0xff]
          %v529 = vld [vmem:[#allocation9 + $0x58] sm:$0xff]
          %v530 = vld [vmem:[#allocation9 + $0x60] sm:$0xff]
          %v531 = vld [vmem:[#allocation9 + $0x68] sm:$0xff]
          %v532 = vld [vmem:[#allocation9 + $0x70] sm:$0xff]
          %v533 = vld [vmem:[#allocation9 + $0x78] sm:$0xff]
          %v534 = vld [vmem:[#allocation9 + $0x80] sm:$0xff]
          %v535 = vld [vmem:[#allocation9 + $0x88] sm:$0xff]
          %v536 = vld [vmem:[#allocation9 + $0x90] sm:$0xff]
          %v537 = vld [vmem:[#allocation9 + $0x98] sm:$0xff]
          %v538 = vld [vmem:[#allocation9 + $0xa0] sm:$0xff]
          %v539 = vld [vmem:[#allocation9 + $0xa8] sm:$0xff]
          %v540 = vld [vmem:[#allocation9 + $0xb0] sm:$0xff]
          %v541 = vld [vmem:[#allocation9 + $0xb8] sm:$0xff]
          %v542 = vld [vmem:[#allocation9 + $0xc0] sm:$0xff]
          %v543 = vld [vmem:[#allocation9 + $0xc8] sm:$0xff]
          %v544 = vld [vmem:[#allocation9 + $0xd0] sm:$0xff]
          %v545 = vld [vmem:[#allocation9 + $0xd8] sm:$0xff]
          %v546 = vld [vmem:[#allocation9 + $0xe0] sm:$0xff]
          %v547 = vld [vmem:[#allocation9 + $0xe8] sm:$0xff]
          %v548 = vld [vmem:[#allocation9 + $0xf0] sm:$0xff]
          %v549 = vld [vmem:[#allocation9 + $0xf8] sm:$0xff]
          %v550 = vld [vmem:[#allocation9 + $0x100] sm:$0xff]
          %v551 = vld [vmem:[#allocation9 + $0x108] sm:$0xff]
          %v552 = vld [vmem:[#allocation9 + $0x110] sm:$0xff]
          %v553 = vld [vmem:[#allocation9 + $0x118] sm:$0xff]
          %v554 = vld [vmem:[#allocation9 + $0x120] sm:$0xff]
          %v555 = vld [vmem:[#allocation9 + $0x128] sm:$0xff]
          %v556 = vld [vmem:[#allocation9 + $0x130] sm:$0xff]
          %v557 = vld [vmem:[#allocation9 + $0x138] sm:$0xff]
          %v558 = vld [vmem:[#allocation9 + $0x140] sm:$0xff]
          %v559 = vld [vmem:[#allocation9 + $0x148] sm:$0xff]
          %v560 = vld [vmem:[#allocation9 + $0x150] sm:$0xff]
          %v561 = vld [vmem:[#allocation9 + $0x158] sm:$0xff]
          %v562 = vld [vmem:[#allocation9 + $0x160] sm:$0xff]
          %v563 = vld [vmem:[#allocation9 + $0x168] sm:$0xff]
          %v564 = vld [vmem:[#allocation9 + $0x170] sm:$0xff]
          %v565 = vld [vmem:[#allocation9 + $0x178] sm:$0xff]
          %v566 = vld [vmem:[#allocation9 + $0x180] sm:$0xff]
          %v567 = vld [vmem:[#allocation9 + $0x188] sm:$0xff]
          %v568 = vld [vmem:[#allocation9 + $0x190] sm:$0xff]
          %v569 = vld [vmem:[#allocation9 + $0x198] sm:$0xff]
          %v570 = vld [vmem:[#allocation9 + $0x1a0] sm:$0xff]
          %v571 = vld [vmem:[#allocation9 + $0x1a8] sm:$0xff]
          %v572 = vld [vmem:[#allocation9 + $0x1b0] sm:$0xff]
          %v573 = vld [vmem:[#allocation9 + $0x1b8] sm:$0xff]
          %v574 = vld [vmem:[#allocation9 + $0x1c0] sm:$0xff]
          %v575 = vld [vmem:[#allocation9 + $0x1c8] sm:$0xff]
          %v576 = vld [vmem:[#allocation9 + $0x1d0] sm:$0xff]
          %v577 = vld [vmem:[#allocation9 + $0x1d8] sm:$0xff]
          %v578 = vld [vmem:[#allocation9 + $0x1e0] sm:$0xff]
          %v579 = vld [vmem:[#allocation9 + $0x1e8] sm:$0xff]
          %v580 = vld [vmem:[#allocation9 + $0x1f0] sm:$0xff]
          %v581 = vld [vmem:[#allocation9 + $0x1f8] sm:$0xff]
          %v582 = vld [vmem:[#allocation9 + $0x200] sm:$0xff]
          %v583 = vld [vmem:[#allocation9 + $0x208] sm:$0xff]
          %v584 = vld [vmem:[#allocation9 + $0x210] sm:$0xff]
          %v585 = vld [vmem:[#allocation9 + $0x218] sm:$0xff]
          %v586 = vld [vmem:[#allocation9 + $0x220] sm:$0xff]
          %v587 = vld [vmem:[#allocation9 + $0x228] sm:$0xff]
          %v588 = vld [vmem:[#allocation9 + $0x230] sm:$0xff]
          %v589 = vld [vmem:[#allocation9 + $0x238] sm:$0xff]
          %v590 = vld [vmem:[#allocation9 + $0x240] sm:$0xff]
          %v591 = vld [vmem:[#allocation9 + $0x248] sm:$0xff]
          %v592 = vld [vmem:[#allocation9 + $0x250] sm:$0xff]
          %v593 = vld [vmem:[#allocation9 + $0x258] sm:$0xff]
          %v594 = vld [vmem:[#allocation9 + $0x260] sm:$0xff]
          %v595 = vld [vmem:[#allocation9 + $0x268] sm:$0xff]
          %v596 = vld [vmem:[#allocation9 + $0x270] sm:$0xff]
          %v597 = vld [vmem:[#allocation9 + $0x278] sm:$0xff]
          %v598 = vld [vmem:[#allocation9 + $0x280] sm:$0xff]
          %v599 = vld [vmem:[#allocation9 + $0x288] sm:$0xff]
          %v600 = vld [vmem:[#allocation9 + $0x290] sm:$0xff]
          %v601 = vld [vmem:[#allocation9 + $0x298] sm:$0xff]
          %v602 = vld [vmem:[#allocation9 + $0x2a0] sm:$0xff]
          %v603 = vld [vmem:[#allocation9 + $0x2a8] sm:$0xff]
          %v604 = vld [vmem:[#allocation9 + $0x2b0] sm:$0xff]
          %v605 = vld [vmem:[#allocation9 + $0x2b8] sm:$0xff]
          %v606 = vld [vmem:[#allocation9 + $0x2c0] sm:$0xff]
          %v607 = vld [vmem:[#allocation9 + $0x2c8] sm:$0xff]
          %v608 = vld [vmem:[#allocation9 + $0x2d0] sm:$0xff]
          %v609 = vld [vmem:[#allocation9 + $0x2d8] sm:$0xff]
          %v610 = vld [vmem:[#allocation9 + $0x2e0] sm:$0xff]
          %v611 = vld [vmem:[#allocation9 + $0x2e8] sm:$0xff]
          %v612 = vld [vmem:[#allocation9 + $0x2f0] sm:$0xff]
          %v613 = vld [vmem:[#allocation9 + $0x2f8] sm:$0xff]
          %v614 = vld [vmem:[#allocation9 + $0x300] sm:$0xff]
          %v615 = vld [vmem:[#allocation9 + $0x308] sm:$0xff]
          %v616 = vld [vmem:[#allocation9 + $0x310] sm:$0xff]
          %v617 = vld [vmem:[#allocation9 + $0x318] sm:$0xff]
          %v618 = vld [vmem:[#allocation9 + $0x320] sm:$0xff]
          %v619 = vld [vmem:[#allocation9 + $0x328] sm:$0xff]
          %v620 = vld [vmem:[#allocation9 + $0x330] sm:$0xff]
          %v621 = vld [vmem:[#allocation9 + $0x338] sm:$0xff]
          %v622 = vld [vmem:[#allocation9 + $0x340] sm:$0xff]
          %v623 = vld [vmem:[#allocation9 + $0x348] sm:$0xff]
          %v624 = vld [vmem:[#allocation9 + $0x350] sm:$0xff]
          %v625 = vld [vmem:[#allocation9 + $0x358] sm:$0xff]
          %v626 = vld [vmem:[#allocation9 + $0x360] sm:$0xff]
          %v627 = vld [vmem:[#allocation9 + $0x368] sm:$0xff]
          %v628 = vld [vmem:[#allocation9 + $0x370] sm:$0xff]
          %v629 = vld [vmem:[#allocation9 + $0x378] sm:$0xff]
          %v630 = vld [vmem:[#allocation9 + $0x380] sm:$0xff]
          %v631 = vld [vmem:[#allocation9 + $0x388] sm:$0xff]
          %v632 = vld [vmem:[#allocation9 + $0x390] sm:$0xff]
          %v633 = vld [vmem:[#allocation9 + $0x398] sm:$0xff]
          %v634 = vld [vmem:[#allocation9 + $0x3a0] sm:$0xff]
          %v635 = vld [vmem:[#allocation9 + $0x3a8] sm:$0xff]
          %v636 = vld [vmem:[#allocation9 + $0x3b0] sm:$0xff]
          %v637 = vld [vmem:[#allocation9 + $0x3b8] sm:$0xff]
          %v638 = vld [vmem:[#allocation9 + $0x3c0] sm:$0xff]
          %v639 = vld [vmem:[#allocation9 + $0x3c8] sm:$0xff]
          %v640 = vld [vmem:[#allocation9 + $0x3d0] sm:$0xff]
          %v641 = vld [vmem:[#allocation9 + $0x3d8] sm:$0xff]
          %v642 = vld [vmem:[#allocation9 + $0x3e0] sm:$0xff]
          %v643 = vld [vmem:[#allocation9 + $0x3e8] sm:$0xff]
          %v644 = vld [vmem:[#allocation9 + $0x3f0] sm:$0xff]
          %v645 = vld [vmem:[#allocation9 + $0x3f8] sm:$0xff]
          %v646 = vld [vmem:[#allocation11] sm:$0xff]
          %v647 = vld [vmem:[#allocation11 + $0x8] sm:$0xff]
          %v776 = vunpack.c.l.b16 %v518
          %v777 = vunpack.c.h.b16 %v518
          %v778 = vunpack.c.l.b16 %v519
          %v779 = vunpack.c.h.b16 %v519
          %v780 = vunpack.c.l.b16 %v520
          %v781 = vunpack.c.h.b16 %v520
          %v782 = vunpack.c.l.b16 %v521
          %v783 = vunpack.c.h.b16 %v521
          %v784 = vunpack.c.l.b16 %v522
          %v785 = vunpack.c.h.b16 %v522
          %v786 = vunpack.c.l.b16 %v523
          %v787 = vunpack.c.h.b16 %v523
          %v788 = vunpack.c.l.b16 %v524
          %v789 = vunpack.c.h.b16 %v524
          %v790 = vunpack.c.l.b16 %v525
          %v791 = vunpack.c.h.b16 %v525
          %v792 = vunpack.c.l.b16 %v526
          %v793 = vunpack.c.h.b16 %v526
          %v794 = vunpack.c.l.b16 %v527
          %v795 = vunpack.c.h.b16 %v527
          %v796 = vunpack.c.l.b16 %v528
          %v797 = vunpack.c.h.b16 %v528
          %v798 = vunpack.c.l.b16 %v529
          %v799 = vunpack.c.h.b16 %v529
          %v800 = vunpack.c.l.b16 %v530
          %v801 = vunpack.c.h.b16 %v530
          %v802 = vunpack.c.l.b16 %v531
          %v803 = vunpack.c.h.b16 %v531
          %v804 = vunpack.c.l.b16 %v532
          %v805 = vunpack.c.h.b16 %v532
          %v806 = vunpack.c.l.b16 %v533
          %v807 = vunpack.c.h.b16 %v533
          %v808 = vunpack.c.l.b16 %v534
          %v809 = vunpack.c.h.b16 %v534
          %v810 = vunpack.c.l.b16 %v535
          %v811 = vunpack.c.h.b16 %v535
          %v812 = vunpack.c.l.b16 %v536
          %v813 = vunpack.c.h.b16 %v536
          %v814 = vunpack.c.l.b16 %v537
          %v815 = vunpack.c.h.b16 %v537
          %v816 = vunpack.c.l.b16 %v538
          %v817 = vunpack.c.h.b16 %v538
          %v818 = vunpack.c.l.b16 %v539
          %v819 = vunpack.c.h.b16 %v539
          %v820 = vunpack.c.l.b16 %v540
          %v821 = vunpack.c.h.b16 %v540
          %v822 = vunpack.c.l.b16 %v541
          %v823 = vunpack.c.h.b16 %v541
          %v824 = vunpack.c.l.b16 %v542
          %v825 = vunpack.c.h.b16 %v542
          %v826 = vunpack.c.l.b16 %v543
          %v827 = vunpack.c.h.b16 %v543
          %v828 = vunpack.c.l.b16 %v544
          %v829 = vunpack.c.h.b16 %v544
          %v830 = vunpack.c.l.b16 %v545
          %v831 = vunpack.c.h.b16 %v545
          %v832 = vunpack.c.l.b16 %v546
          %v833 = vunpack.c.h.b16 %v546
          %v834 = vunpack.c.l.b16 %v547
          %v835 = vunpack.c.h.b16 %v547
          %v836 = vunpack.c.l.b16 %v548
          %v837 = vunpack.c.h.b16 %v548
          %v838 = vunpack.c.l.b16 %v549
          %v839 = vunpack.c.h.b16 %v549
          %v840 = vunpack.c.l.b16 %v550
          %v841 = vunpack.c.h.b16 %v550
          %v842 = vunpack.c.l.b16 %v551
          %v843 = vunpack.c.h.b16 %v551
          %v844 = vunpack.c.l.b16 %v552
          %v845 = vunpack.c.h.b16 %v552
          %v846 = vunpack.c.l.b16 %v553
          %v847 = vunpack.c.h.b16 %v553
          %v848 = vunpack.c.l.b16 %v554
          %v849 = vunpack.c.h.b16 %v554
          %v850 = vunpack.c.l.b16 %v555
          %v851 = vunpack.c.h.b16 %v555
          %v852 = vunpack.c.l.b16 %v556
          %v853 = vunpack.c.h.b16 %v556
          %v854 = vunpack.c.l.b16 %v557
          %v855 = vunpack.c.h.b16 %v557
          %v856 = vunpack.c.l.b16 %v558
          %v857 = vunpack.c.h.b16 %v558
          %v858 = vunpack.c.l.b16 %v559
          %v859 = vunpack.c.h.b16 %v559
          %v860 = vunpack.c.l.b16 %v560
          %v861 = vunpack.c.h.b16 %v560
          %v862 = vunpack.c.l.b16 %v561
          %v863 = vunpack.c.h.b16 %v561
          %v864 = vunpack.c.l.b16 %v562
          %v865 = vunpack.c.h.b16 %v562
          %v866 = vunpack.c.l.b16 %v563
          %v867 = vunpack.c.h.b16 %v563
          %v868 = vunpack.c.l.b16 %v564
          %v869 = vunpack.c.h.b16 %v564
          %v870 = vunpack.c.l.b16 %v565
          %v871 = vunpack.c.h.b16 %v565
          %v872 = vunpack.c.l.b16 %v566
          %v873 = vunpack.c.h.b16 %v566
          %v874 = vunpack.c.l.b16 %v567
          %v875 = vunpack.c.h.b16 %v567
          %v876 = vunpack.c.l.b16 %v568
          %v877 = vunpack.c.h.b16 %v568
          %v878 = vunpack.c.l.b16 %v569
          %v879 = vunpack.c.h.b16 %v569
          %v880 = vunpack.c.l.b16 %v570
          %v881 = vunpack.c.h.b16 %v570
          %v882 = vunpack.c.l.b16 %v571
          %v883 = vunpack.c.h.b16 %v571
          %v884 = vunpack.c.l.b16 %v572
          %v885 = vunpack.c.h.b16 %v572
          %v886 = vunpack.c.l.b16 %v573
          %v887 = vunpack.c.h.b16 %v573
          %v888 = vunpack.c.l.b16 %v574
          %v889 = vunpack.c.h.b16 %v574
          %v890 = vunpack.c.l.b16 %v575
          %v891 = vunpack.c.h.b16 %v575
          %v892 = vunpack.c.l.b16 %v576
          %v893 = vunpack.c.h.b16 %v576
          %v894 = vunpack.c.l.b16 %v577
          %v895 = vunpack.c.h.b16 %v577
          %v896 = vunpack.c.l.b16 %v578
          %v897 = vunpack.c.h.b16 %v578
          %v898 = vunpack.c.l.b16 %v579
          %v899 = vunpack.c.h.b16 %v579
          %v900 = vunpack.c.l.b16 %v580
          %v901 = vunpack.c.h.b16 %v580
          %v902 = vunpack.c.l.b16 %v581
          %v903 = vunpack.c.h.b16 %v581
          %v904 = vunpack.c.l.b16 %v582
          %v905 = vunpack.c.h.b16 %v582
          %v906 = vunpack.c.l.b16 %v583
          %v907 = vunpack.c.h.b16 %v583
          %v908 = vunpack.c.l.b16 %v584
          %v909 = vunpack.c.h.b16 %v584
          %v910 = vunpack.c.l.b16 %v585
          %v911 = vunpack.c.h.b16 %v585
          %v912 = vunpack.c.l.b16 %v586
          %v913 = vunpack.c.h.b16 %v586
          %v914 = vunpack.c.l.b16 %v587
          %v915 = vunpack.c.h.b16 %v587
          %v916 = vunpack.c.l.b16 %v588
          %v917 = vunpack.c.h.b16 %v588
          %v918 = vunpack.c.l.b16 %v589
          %v919 = vunpack.c.h.b16 %v589
          %v920 = vunpack.c.l.b16 %v590
          %v921 = vunpack.c.h.b16 %v590
          %v922 = vunpack.c.l.b16 %v591
          %v923 = vunpack.c.h.b16 %v591
          %v924 = vunpack.c.l.b16 %v592
          %v925 = vunpack.c.h.b16 %v592
          %v926 = vunpack.c.l.b16 %v593
          %v927 = vunpack.c.h.b16 %v593
          %v928 = vunpack.c.l.b16 %v594
          %v929 = vunpack.c.h.b16 %v594
          %v930 = vunpack.c.l.b16 %v595
          %v931 = vunpack.c.h.b16 %v595
          %v932 = vunpack.c.l.b16 %v596
          %v933 = vunpack.c.h.b16 %v596
          %v934 = vunpack.c.l.b16 %v597
          %v935 = vunpack.c.h.b16 %v597
          %v936 = vunpack.c.l.b16 %v598
          %v937 = vunpack.c.h.b16 %v598
          %v938 = vunpack.c.l.b16 %v599
          %v939 = vunpack.c.h.b16 %v599
          %v940 = vunpack.c.l.b16 %v600
          %v941 = vunpack.c.h.b16 %v600
          %v942 = vunpack.c.l.b16 %v601
          %v943 = vunpack.c.h.b16 %v601
          %v944 = vunpack.c.l.b16 %v602
          %v945 = vunpack.c.h.b16 %v602
          %v946 = vunpack.c.l.b16 %v603
          %v947 = vunpack.c.h.b16 %v603
          %v948 = vunpack.c.l.b16 %v604
          %v949 = vunpack.c.h.b16 %v604
          %v950 = vunpack.c.l.b16 %v605
          %v951 = vunpack.c.h.b16 %v605
          %v952 = vunpack.c.l.b16 %v606
          %v953 = vunpack.c.h.b16 %v606
          %v954 = vunpack.c.l.b16 %v607
          %v955 = vunpack.c.h.b16 %v607
          %v956 = vunpack.c.l.b16 %v608
          %v957 = vunpack.c.h.b16 %v608
          %v958 = vunpack.c.l.b16 %v609
          %v959 = vunpack.c.h.b16 %v609
          %v960 = vunpack.c.l.b16 %v610
          %v961 = vunpack.c.h.b16 %v610
          %v962 = vunpack.c.l.b16 %v611
          %v963 = vunpack.c.h.b16 %v611
          %v964 = vunpack.c.l.b16 %v612
          %v965 = vunpack.c.h.b16 %v612
          %v966 = vunpack.c.l.b16 %v613
          %v967 = vunpack.c.h.b16 %v613
          %v968 = vunpack.c.l.b16 %v614
          %v969 = vunpack.c.h.b16 %v614
          %v970 = vunpack.c.l.b16 %v615
          %v971 = vunpack.c.h.b16 %v615
          %v972 = vunpack.c.l.b16 %v616
          %v973 = vunpack.c.h.b16 %v616
          %v974 = vunpack.c.l.b16 %v617
          %v975 = vunpack.c.h.b16 %v617
          %v976 = vunpack.c.l.b16 %v618
          %v977 = vunpack.c.h.b16 %v618
          %v978 = vunpack.c.l.b16 %v619
          %v979 = vunpack.c.h.b16 %v619
          %v980 = vunpack.c.l.b16 %v620
          %v981 = vunpack.c.h.b16 %v620
          %v982 = vunpack.c.l.b16 %v621
          %v983 = vunpack.c.h.b16 %v621
          %v984 = vunpack.c.l.b16 %v622
          %v985 = vunpack.c.h.b16 %v622
          %v986 = vunpack.c.l.b16 %v623
          %v987 = vunpack.c.h.b16 %v623
          %v988 = vunpack.c.l.b16 %v624
          %v989 = vunpack.c.h.b16 %v624
          %v990 = vunpack.c.l.b16 %v625
          %v991 = vunpack.c.h.b16 %v625
          %v992 = vunpack.c.l.b16 %v626
          %v993 = vunpack.c.h.b16 %v626
          %v994 = vunpack.c.l.b16 %v627
          %v995 = vunpack.c.h.b16 %v627
          %v996 = vunpack.c.l.b16 %v628
          %v997 = vunpack.c.h.b16 %v628
          %v998 = vunpack.c.l.b16 %v629
          %v999 = vunpack.c.h.b16 %v629
          %v1000 = vunpack.c.l.b16 %v630
          %v1001 = vunpack.c.h.b16 %v630
          %v1002 = vunpack.c.l.b16 %v631
          %v1003 = vunpack.c.h.b16 %v631
          %v1004 = vunpack.c.l.b16 %v632
          %v1005 = vunpack.c.h.b16 %v632
          %v1006 = vunpack.c.l.b16 %v633
          %v1007 = vunpack.c.h.b16 %v633
          %v1008 = vunpack.c.l.b16 %v634
          %v1009 = vunpack.c.h.b16 %v634
          %v1010 = vunpack.c.l.b16 %v635
          %v1011 = vunpack.c.h.b16 %v635
          %v1012 = vunpack.c.l.b16 %v636
          %v1013 = vunpack.c.h.b16 %v636
          %v1014 = vunpack.c.l.b16 %v637
          %v1015 = vunpack.c.h.b16 %v637
          %v1016 = vunpack.c.l.b16 %v638
          %v1017 = vunpack.c.h.b16 %v638
          %v1018 = vunpack.c.l.b16 %v639
          %v1019 = vunpack.c.h.b16 %v639
          %v1020 = vunpack.c.l.b16 %v640
          %v1021 = vunpack.c.h.b16 %v640
          %v1022 = vunpack.c.l.b16 %v641
          %v1023 = vunpack.c.h.b16 %v641
          %v1024 = vunpack.c.l.b16 %v642
          %v1025 = vunpack.c.h.b16 %v642
          %v1026 = vunpack.c.l.b16 %v643
          %v1027 = vunpack.c.h.b16 %v643
          %v1028 = vunpack.c.l.b16 %v644
          %v1029 = vunpack.c.h.b16 %v644
          %v1030 = vunpack.c.l.b16 %v645
          %v1031 = vunpack.c.h.b16 %v645
          %v1032 = vpack.c.b16 %v792, %v776
          %v1033 = vpack.c.b16 %v793, %v777
          %v1034 = vpack.c.b16 %v794, %v778
          %v1035 = vpack.c.b16 %v795, %v779
          %v1036 = vpack.c.b16 %v796, %v780
          %v1037 = vpack.c.b16 %v797, %v781
          %v1038 = vpack.c.b16 %v798, %v782
          %v1039 = vpack.c.b16 %v799, %v783
          %v1040 = vpack.c.b16 %v800, %v784
          %v1041 = vpack.c.b16 %v801, %v785
          %v1042 = vpack.c.b16 %v802, %v786
          %v1043 = vpack.c.b16 %v803, %v787
          %v1044 = vpack.c.b16 %v804, %v788
          %v1045 = vpack.c.b16 %v805, %v789
          %v1046 = vpack.c.b16 %v806, %v790
          %v1047 = vpack.c.b16 %v807, %v791
          %v1048 = vpack.c.b16 %v824, %v808
          %v1049 = vpack.c.b16 %v825, %v809
          %v1050 = vpack.c.b16 %v826, %v810
          %v1051 = vpack.c.b16 %v827, %v811
          %v1052 = vpack.c.b16 %v828, %v812
          %v1053 = vpack.c.b16 %v829, %v813
          %v1054 = vpack.c.b16 %v830, %v814
          %v1055 = vpack.c.b16 %v831, %v815
          %v1056 = vpack.c.b16 %v832, %v816
          %v1057 = vpack.c.b16 %v833, %v817
          %v1058 = vpack.c.b16 %v834, %v818
          %v1059 = vpack.c.b16 %v835, %v819
          %v1060 = vpack.c.b16 %v836, %v820
          %v1061 = vpack.c.b16 %v837, %v821
          %v1062 = vpack.c.b16 %v838, %v822
          %v1063 = vpack.c.b16 %v839, %v823
          %v1064 = vpack.c.b16 %v856, %v840
          %v1065 = vpack.c.b16 %v857, %v841
          %v1066 = vpack.c.b16 %v858, %v842
          %v1067 = vpack.c.b16 %v859, %v843
          %v1068 = vpack.c.b16 %v860, %v844
          %v1069 = vpack.c.b16 %v861, %v845
          %v1070 = vpack.c.b16 %v862, %v846
          %v1071 = vpack.c.b16 %v863, %v847
          %v1072 = vpack.c.b16 %v864, %v848
          %v1073 = vpack.c.b16 %v865, %v849
          %v1074 = vpack.c.b16 %v866, %v850
          %v1075 = vpack.c.b16 %v867, %v851
          %v1076 = vpack.c.b16 %v868, %v852
          %v1077 = vpack.c.b16 %v869, %v853
          %v1078 = vpack.c.b16 %v870, %v854
          %v1079 = vpack.c.b16 %v871, %v855
          %v1080 = vpack.c.b16 %v888, %v872
          %v1081 = vpack.c.b16 %v889, %v873
          %v1082 = vpack.c.b16 %v890, %v874
          %v1083 = vpack.c.b16 %v891, %v875
          %v1084 = vpack.c.b16 %v892, %v876
          %v1085 = vpack.c.b16 %v893, %v877
          %v1086 = vpack.c.b16 %v894, %v878
          %v1087 = vpack.c.b16 %v895, %v879
          %v1088 = vpack.c.b16 %v896, %v880
          %v1089 = vpack.c.b16 %v897, %v881
          %v1090 = vpack.c.b16 %v898, %v882
          %v1091 = vpack.c.b16 %v899, %v883
          %v1092 = vpack.c.b16 %v900, %v884
          %v1093 = vpack.c.b16 %v901, %v885
          %v1094 = vpack.c.b16 %v902, %v886
          %v1095 = vpack.c.b16 %v903, %v887
          %v1096 = vpack.c.b16 %v920, %v904
          %v1097 = vpack.c.b16 %v921, %v905
          %v1098 = vpack.c.b16 %v922, %v906
          %v1099 = vpack.c.b16 %v923, %v907
          %v1100 = vpack.c.b16 %v924, %v908
          %v1101 = vpack.c.b16 %v925, %v909
          %v1102 = vpack.c.b16 %v926, %v910
          %v1103 = vpack.c.b16 %v927, %v911
          %v1104 = vpack.c.b16 %v928, %v912
          %v1105 = vpack.c.b16 %v929, %v913
          %v1106 = vpack.c.b16 %v930, %v914
          %v1107 = vpack.c.b16 %v931, %v915
          %v1108 = vpack.c.b16 %v932, %v916
          %v1109 = vpack.c.b16 %v933, %v917
          %v1110 = vpack.c.b16 %v934, %v918
          %v1111 = vpack.c.b16 %v935, %v919
          %v1112 = vpack.c.b16 %v952, %v936
          %v1113 = vpack.c.b16 %v953, %v937
          %v1114 = vpack.c.b16 %v954, %v938
          %v1115 = vpack.c.b16 %v955, %v939
          %v1116 = vpack.c.b16 %v956, %v940
          %v1117 = vpack.c.b16 %v957, %v941
          %v1118 = vpack.c.b16 %v958, %v942
          %v1119 = vpack.c.b16 %v959, %v943
          %v1120 = vpack.c.b16 %v960, %v944
          %v1121 = vpack.c.b16 %v961, %v945
          %v1122 = vpack.c.b16 %v962, %v946
          %v1123 = vpack.c.b16 %v963, %v947
          %v1124 = vpack.c.b16 %v964, %v948
          %v1125 = vpack.c.b16 %v965, %v949
          %v1126 = vpack.c.b16 %v966, %v950
          %v1127 = vpack.c.b16 %v967, %v951
          %v1128 = vpack.c.b16 %v984, %v968
          %v1129 = vpack.c.b16 %v985, %v969
          %v1130 = vpack.c.b16 %v986, %v970
          %v1131 = vpack.c.b16 %v987, %v971
          %v1132 = vpack.c.b16 %v988, %v972
          %v1133 = vpack.c.b16 %v989, %v973
          %v1134 = vpack.c.b16 %v990, %v974
          %v1135 = vpack.c.b16 %v991, %v975
          %v1136 = vpack.c.b16 %v992, %v976
          %v1137 = vpack.c.b16 %v993, %v977
          %v1138 = vpack.c.b16 %v994, %v978
          %v1139 = vpack.c.b16 %v995, %v979
          %v1140 = vpack.c.b16 %v996, %v980
          %v1141 = vpack.c.b16 %v997, %v981
          %v1142 = vpack.c.b16 %v998, %v982
          %v1143 = vpack.c.b16 %v999, %v983
          %v1144 = vpack.c.b16 %v1016, %v1000
          %v1145 = vpack.c.b16 %v1017, %v1001
          %v1146 = vpack.c.b16 %v1018, %v1002
          %v1147 = vpack.c.b16 %v1019, %v1003
          %v1148 = vpack.c.b16 %v1020, %v1004
          %v1149 = vpack.c.b16 %v1021, %v1005
          %v1150 = vpack.c.b16 %v1022, %v1006
          %v1151 = vpack.c.b16 %v1023, %v1007
          %v1152 = vpack.c.b16 %v1024, %v1008
          %v1153 = vpack.c.b16 %v1025, %v1009
          %v1154 = vpack.c.b16 %v1026, %v1010
          %v1155 = vpack.c.b16 %v1027, %v1011
          %v1156 = vpack.c.b16 %v1028, %v1012
          %v1157 = vpack.c.b16 %v1029, %v1013
          %v1158 = vpack.c.b16 %v1030, %v1014
          %v1159 = vpack.c.b16 %v1031, %v1015
          %v1290 = vlaneseq
          %v1291 = vshrl.u32 %v1290, 7
          %v1292 = vsub.s32 0, %v1291
          %v1293 = vrot.slane %v646, %v1292
          %v1294 = vlaneseq
          %v1295 = vshrl.u32 %v1294, 7
          %v1296 = vsub.s32 1, %v1295
          %v1297 = vrot.slane %v646, %v1296
          %v1298 = vlaneseq
          %v1299 = vshrl.u32 %v1298, 7
          %v1300 = vsub.s32 2, %v1299
          %v1301 = vrot.slane %v646, %v1300
          %v1302 = vlaneseq
          %v1303 = vshrl.u32 %v1302, 7
          %v1304 = vsub.s32 3, %v1303
          %v1305 = vrot.slane %v646, %v1304
          %v1306 = vlaneseq
          %v1307 = vshrl.u32 %v1306, 7
          %v1308 = vsub.s32 4, %v1307
          %v1309 = vrot.slane %v646, %v1308
          %v1310 = vlaneseq
          %v1311 = vshrl.u32 %v1310, 7
          %v1312 = vsub.s32 5, %v1311
          %v1313 = vrot.slane %v646, %v1312
          %v1314 = vlaneseq
          %v1315 = vshrl.u32 %v1314, 7
          %v1316 = vsub.s32 6, %v1315
          %v1317 = vrot.slane %v646, %v1316
          %v1318 = vlaneseq
          %v1319 = vshrl.u32 %v1318, 7
          %v1320 = vsub.s32 7, %v1319
          %v1321 = vrot.slane %v646, %v1320
          %v1322 = vlaneseq
          %v1323 = vshrl.u32 %v1322, 7
          %v1324 = vsub.s32 0, %v1323
          %v1325 = vrot.slane %v647, %v1324
          %v1326 = vlaneseq
          %v1327 = vshrl.u32 %v1326, 7
          %v1328 = vsub.s32 1, %v1327
          %v1329 = vrot.slane %v647, %v1328
          %v1330 = vlaneseq
          %v1331 = vshrl.u32 %v1330, 7
          %v1332 = vsub.s32 2, %v1331
          %v1333 = vrot.slane %v647, %v1332
          %v1334 = vlaneseq
          %v1335 = vshrl.u32 %v1334, 7
          %v1336 = vsub.s32 3, %v1335
          %v1337 = vrot.slane %v647, %v1336
          %v1338 = vlaneseq
          %v1339 = vshrl.u32 %v1338, 7
          %v1340 = vsub.s32 4, %v1339
          %v1341 = vrot.slane %v647, %v1340
          %v1342 = vlaneseq
          %v1343 = vshrl.u32 %v1342, 7
          %v1344 = vsub.s32 5, %v1343
          %v1345 = vrot.slane %v647, %v1344
          %v1346 = vlaneseq
          %v1347 = vshrl.u32 %v1346, 7
          %v1348 = vsub.s32 6, %v1347
          %v1349 = vrot.slane %v647, %v1348
          %v1350 = vlaneseq
          %v1351 = vshrl.u32 %v1350, 7
          %v1352 = vsub.s32 7, %v1351
          %v1353 = vrot.slane %v647, %v1352
          %1370 = vmatprep.subr.bf16.mxu0 %v1033
          %1371 = vmatpush1.bf16.msra.mxu0 %v1032
          %1372 = vmatprep.subr.bf16.mxu0 %v1049
          %1373 = vmatpush1.bf16.msra.mxu0 %v1048
          %1374 = vmatprep.subr.bf16.mxu0 %v1065
          %1375 = vmatpush1.bf16.msra.mxu0 %v1064
          %1376 = vmatprep.subr.bf16.mxu0 %v1081
          %1377 = vmatpush1.bf16.msra.mxu0 %v1080
          %1378 = vmatprep.subr.bf16.mxu0 %v1097
          %1379 = vmatpush1.bf16.msra.mxu0 %v1096
          %1380 = vmatprep.subr.bf16.mxu0 %v1113
          %1381 = vmatpush1.bf16.msra.mxu0 %v1112
          %1382 = vmatprep.subr.bf16.mxu0 %v1129
          %1383 = vmatpush1.bf16.msra.mxu0 %v1128
          %1384 = vmatprep.subr.bf16.mxu0 %v1145
          %1385 = vmatpush1.bf16.msra.mxu0 %v1144
          %1386 = vmatprep.subr.bf16.mxu0 0
          %1387 = vmatpush1.bf16.msra.mxu0 0
          %1388 = vmatprep.subr.bf16.mxu0 0
          %1389 = vmatpush1.bf16.msra.mxu0 0
          %1390 = vmatprep.subr.bf16.mxu0 0
          %1391 = vmatpush1.bf16.msra.mxu0 0
          %1392 = vmatprep.subr.bf16.mxu0 0
          %1393 = vmatpush1.bf16.msra.mxu0 0
          %1394 = vmatprep.subr.bf16.mxu0 0
          %1395 = vmatpush1.bf16.msra.mxu0 0
          %1396 = vmatprep.subr.bf16.mxu0 0
          %1397 = vmatpush1.bf16.msra.mxu0 0
          %1398 = vmatprep.subr.bf16.mxu0 0
          %1399 = vmatpush1.bf16.msra.mxu0 0
          %1400 = vmatprep.subr.bf16.mxu0 0
          %1401 = vmatpush1.bf16.msra.mxu0 0
          %1402 = vmatprep.mubr.bf16.mxu0 0
          %1403 = vmatmul.mubr.bf16.gmra.mrb[0].mxu0 %v517
          %v1404 = vpop.f32.mrb[0].mxu0
          %v1405 = vadd.f32 %v1293, %v1404
          %v1406 = vpop.f32.mrb[0].mxu0
          %v1407 = vadd.f32 %v1297, %v1406
          %v1408 = vpop.f32.mrb[0].mxu0
          %v1409 = vpop.f32.mrb[0].mxu0
          %1410 = vdwg.mxu0
          %1411 = vmatprep.subr.bf16.mxu0 %v1035
          %1412 = vmatpush1.bf16.msra.mxu0 %v1034
          %1413 = vmatprep.subr.bf16.mxu0 %v1051
          %1414 = vmatpush1.bf16.msra.mxu0 %v1050
          %1415 = vmatprep.subr.bf16.mxu0 %v1067
          %1416 = vmatpush1.bf16.msra.mxu0 %v1066
          %1417 = vmatprep.subr.bf16.mxu0 %v1083
          %1418 = vmatpush1.bf16.msra.mxu0 %v1082
          %1419 = vmatprep.subr.bf16.mxu0 %v1099
          %1420 = vmatpush1.bf16.msra.mxu0 %v1098
          %1421 = vmatprep.subr.bf16.mxu0 %v1115
          %1422 = vmatpush1.bf16.msra.mxu0 %v1114
          %1423 = vmatprep.subr.bf16.mxu0 %v1131
          %1424 = vmatpush1.bf16.msra.mxu0 %v1130
          %1425 = vmatprep.subr.bf16.mxu0 %v1147
          %1426 = vmatpush1.bf16.msra.mxu0 %v1146
          %1427 = vmatprep.subr.bf16.mxu0 0
          %1428 = vmatpush1.bf16.msra.mxu0 0
          %1429 = vmatprep.subr.bf16.mxu0 0
          %1430 = vmatpush1.bf16.msra.mxu0 0
          %1431 = vmatprep.subr.bf16.mxu0 0
          %1432 = vmatpush1.bf16.msra.mxu0 0
          %1433 = vmatprep.subr.bf16.mxu0 0
          %1434 = vmatpush1.bf16.msra.mxu0 0
          %1435 = vmatprep.subr.bf16.mxu0 0
          %1436 = vmatpush1.bf16.msra.mxu0 0
          %1437 = vmatprep.subr.bf16.mxu0 0
          %1438 = vmatpush1.bf16.msra.mxu0 0
          %1439 = vmatprep.subr.bf16.mxu0 0
          %1440 = vmatpush1.bf16.msra.mxu0 0
          %1441 = vmatprep.subr.bf16.mxu0 0
          %1442 = vmatpush1.bf16.msra.mxu0 0
          %1443 = vmatprep.mubr.bf16.mxu0 0
          %1444 = vmatmul.mubr.bf16.gmra.mrb[0].mxu0 %v517
          %v1445 = vpop.f32.mrb[0].mxu0
          %v1446 = vadd.f32 %v1301, %v1445
          %v1447 = vpop.f32.mrb[0].mxu0
          %v1448 = vadd.f32 %v1305, %v1447
          %v1449 = vpop.f32.mrb[0].mxu0
          %v1450 = vpop.f32.mrb[0].mxu0
          %1451 = vdwg.mxu0
          %1452 = vmatprep.subr.bf16.mxu0 %v1037
          %1453 = vmatpush1.bf16.msra.mxu0 %v1036
          %1454 = vmatprep.subr.bf16.mxu0 %v1053
          %1455 = vmatpush1.bf16.msra.mxu0 %v1052
          %1456 = vmatprep.subr.bf16.mxu0 %v1069
          %1457 = vmatpush1.bf16.msra.mxu0 %v1068
          %1458 = vmatprep.subr.bf16.mxu0 %v1085
          %1459 = vmatpush1.bf16.msra.mxu0 %v1084
          %1460 = vmatprep.subr.bf16.mxu0 %v1101
          %1461 = vmatpush1.bf16.msra.mxu0 %v1100
          %1462 = vmatprep.subr.bf16.mxu0 %v1117
          %1463 = vmatpush1.bf16.msra.mxu0 %v1116
          %1464 = vmatprep.subr.bf16.mxu0 %v1133
          %1465 = vmatpush1.bf16.msra.mxu0 %v1132
          %1466 = vmatprep.subr.bf16.mxu0 %v1149
          %1467 = vmatpush1.bf16.msra.mxu0 %v1148
          %1468 = vmatprep.subr.bf16.mxu0 0
          %1469 = vmatpush1.bf16.msra.mxu0 0
          %1470 = vmatprep.subr.bf16.mxu0 0
          %1471 = vmatpush1.bf16.msra.mxu0 0
          %1472 = vmatprep.subr.bf16.mxu0 0
          %1473 = vmatpush1.bf16.msra.mxu0 0
          %1474 = vmatprep.subr.bf16.mxu0 0
          %1475 = vmatpush1.bf16.msra.mxu0 0
          %1476 = vmatprep.subr.bf16.mxu0 0
          %1477 = vmatpush1.bf16.msra.mxu0 0
          %1478 = vmatprep.subr.bf16.mxu0 0
          %1479 = vmatpush1.bf16.msra.mxu0 0
          %1480 = vmatprep.subr.bf16.mxu0 0
          %1481 = vmatpush1.bf16.msra.mxu0 0
          %1482 = vmatprep.subr.bf16.mxu0 0
          %1483 = vmatpush1.bf16.msra.mxu0 0
          %1484 = vmatprep.mubr.bf16.mxu0 0
          %1485 = vmatmul.mubr.bf16.gmra.mrb[0].mxu0 %v517
          %v1486 = vpop.f32.mrb[0].mxu0
          %v1487 = vadd.f32 %v1309, %v1486
          %v1488 = vpop.f32.mrb[0].mxu0
          %v1489 = vadd.f32 %v1313, %v1488
          %v1490 = vpop.f32.mrb[0].mxu0
          %v1491 = vpop.f32.mrb[0].mxu0
          %1492 = vdwg.mxu0
          %1493 = vmatprep.subr.bf16.mxu0 %v1039
          %1494 = vmatpush1.bf16.msra.mxu0 %v1038
          %1495 = vmatprep.subr.bf16.mxu0 %v1055
          %1496 = vmatpush1.bf16.msra.mxu0 %v1054
          %1497 = vmatprep.subr.bf16.mxu0 %v1071
          %1498 = vmatpush1.bf16.msra.mxu0 %v1070
          %1499 = vmatprep.subr.bf16.mxu0 %v1087
          %1500 = vmatpush1.bf16.msra.mxu0 %v1086
          %1501 = vmatprep.subr.bf16.mxu0 %v1103
          %1502 = vmatpush1.bf16.msra.mxu0 %v1102
          %1503 = vmatprep.subr.bf16.mxu0 %v1119
          %1504 = vmatpush1.bf16.msra.mxu0 %v1118
          %1505 = vmatprep.subr.bf16.mxu0 %v1135
          %1506 = vmatpush1.bf16.msra.mxu0 %v1134
          %1507 = vmatprep.subr.bf16.mxu0 %v1151
          %1508 = vmatpush1.bf16.msra.mxu0 %v1150
          %1509 = vmatprep.subr.bf16.mxu0 0
          %1510 = vmatpush1.bf16.msra.mxu0 0
          %1511 = vmatprep.subr.bf16.mxu0 0
          %1512 = vmatpush1.bf16.msra.mxu0 0
          %1513 = vmatprep.subr.bf16.mxu0 0
          %1514 = vmatpush1.bf16.msra.mxu0 0
          %1515 = vmatprep.subr.bf16.mxu0 0
          %1516 = vmatpush1.bf16.msra.mxu0 0
          %1517 = vmatprep.subr.bf16.mxu0 0
          %1518 = vmatpush1.bf16.msra.mxu0 0
          %1519 = vmatprep.subr.bf16.mxu0 0
          %1520 = vmatpush1.bf16.msra.mxu0 0
          %1521 = vmatprep.subr.bf16.mxu0 0
          %1522 = vmatpush1.bf16.msra.mxu0 0
          %1523 = vmatprep.subr.bf16.mxu0 0
          %1524 = vmatpush1.bf16.msra.mxu0 0
          %1525 = vmatprep.mubr.bf16.mxu0 0
          %1526 = vmatmul.mubr.bf16.gmra.mrb[0].mxu0 %v517
          %v1527 = vpop.f32.mrb[0].mxu0
          %v1528 = vadd.f32 %v1317, %v1527
          %v1529 = vpop.f32.mrb[0].mxu0
          %v1530 = vadd.f32 %v1321, %v1529
          %v1531 = vpop.f32.mrb[0].mxu0
          %v1532 = vpop.f32.mrb[0].mxu0
          %1533 = vdwg.mxu0
          %1534 = vmatprep.subr.bf16.mxu0 %v1041
          %1535 = vmatpush1.bf16.msra.mxu0 %v1040
          %1536 = vmatprep.subr.bf16.mxu0 %v1057
          %1537 = vmatpush1.bf16.msra.mxu0 %v1056
          %1538 = vmatprep.subr.bf16.mxu0 %v1073
          %1539 = vmatpush1.bf16.msra.mxu0 %v1072
          %1540 = vmatprep.subr.bf16.mxu0 %v1089
          %1541 = vmatpush1.bf16.msra.mxu0 %v1088
          %1542 = vmatprep.subr.bf16.mxu0 %v1105
          %1543 = vmatpush1.bf16.msra.mxu0 %v1104
          %1544 = vmatprep.subr.bf16.mxu0 %v1121
          %1545 = vmatpush1.bf16.msra.mxu0 %v1120
          %1546 = vmatprep.subr.bf16.mxu0 %v1137
          %1547 = vmatpush1.bf16.msra.mxu0 %v1136
          %1548 = vmatprep.subr.bf16.mxu0 %v1153
          %1549 = vmatpush1.bf16.msra.mxu0 %v1152
          %1550 = vmatprep.subr.bf16.mxu0 0
          %1551 = vmatpush1.bf16.msra.mxu0 0
          %1552 = vmatprep.subr.bf16.mxu0 0
          %1553 = vmatpush1.bf16.msra.mxu0 0
          %1554 = vmatprep.subr.bf16.mxu0 0
          %1555 = vmatpush1.bf16.msra.mxu0 0
          %1556 = vmatprep.subr.bf16.mxu0 0
          %1557 = vmatpush1.bf16.msra.mxu0 0
          %1558 = vmatprep.subr.bf16.mxu0 0
          %1559 = vmatpush1.bf16.msra.mxu0 0
          %1560 = vmatprep.subr.bf16.mxu0 0
          %1561 = vmatpush1.bf16.msra.mxu0 0
          %1562 = vmatprep.subr.bf16.mxu0 0
          %1563 = vmatpush1.bf16.msra.mxu0 0
          %1564 = vmatprep.subr.bf16.mxu0 0
          %1565 = vmatpush1.bf16.msra.mxu0 0
          %1566 = vmatprep.mubr.bf16.mxu0 0
          %1567 = vmatmul.mubr.bf16.gmra.mrb[0].mxu0 %v517
          %v1568 = vpop.f32.mrb[0].mxu0
          %v1569 = vadd.f32 %v1325, %v1568
          %v1570 = vpop.f32.mrb[0].mxu0
          %v1571 = vadd.f32 %v1329, %v1570
          %v1572 = vpop.f32.mrb[0].mxu0
          %v1573 = vpop.f32.mrb[0].mxu0
          %1574 = vdwg.mxu0
          %1575 = vmatprep.subr.bf16.mxu0 %v1043
          %1576 = vmatpush1.bf16.msra.mxu0 %v1042
          %1577 = vmatprep.subr.bf16.mxu0 %v1059
          %1578 = vmatpush1.bf16.msra.mxu0 %v1058
          %1579 = vmatprep.subr.bf16.mxu0 %v1075
          %1580 = vmatpush1.bf16.msra.mxu0 %v1074
          %1581 = vmatprep.subr.bf16.mxu0 %v1091
          %1582 = vmatpush1.bf16.msra.mxu0 %v1090
          %1583 = vmatprep.subr.bf16.mxu0 %v1107
          %1584 = vmatpush1.bf16.msra.mxu0 %v1106
          %1585 = vmatprep.subr.bf16.mxu0 %v1123
          %1586 = vmatpush1.bf16.msra.mxu0 %v1122
          %1587 = vmatprep.subr.bf16.mxu0 %v1139
          %1588 = vmatpush1.bf16.msra.mxu0 %v1138
          %1589 = vmatprep.subr.bf16.mxu0 %v1155
          %1590 = vmatpush1.bf16.msra.mxu0 %v1154
          %1591 = vmatprep.subr.bf16.mxu0 0
          %1592 = vmatpush1.bf16.msra.mxu0 0
          %1593 = vmatprep.subr.bf16.mxu0 0
          %1594 = vmatpush1.bf16.msra.mxu0 0
          %1595 = vmatprep.subr.bf16.mxu0 0
          %1596 = vmatpush1.bf16.msra.mxu0 0
          %1597 = vmatprep.subr.bf16.mxu0 0
          %1598 = vmatpush1.bf16.msra.mxu0 0
          %1599 = vmatprep.subr.bf16.mxu0 0
          %1600 = vmatpush1.bf16.msra.mxu0 0
          %1601 = vmatprep.subr.bf16.mxu0 0
          %1602 = vmatpush1.bf16.msra.mxu0 0
          %1603 = vmatprep.subr.bf16.mxu0 0
          %1604 = vmatpush1.bf16.msra.mxu0 0
          %1605 = vmatprep.subr.bf16.mxu0 0
          %1606 = vmatpush1.bf16.msra.mxu0 0
          %1607 = vmatprep.mubr.bf16.mxu0 0
          %1608 = vmatmul.mubr.bf16.gmra.mrb[0].mxu0 %v517
          %v1609 = vpop.f32.mrb[0].mxu0
          %v1610 = vadd.f32 %v1333, %v1609
          %v1611 = vpop.f32.mrb[0].mxu0
          %v1612 = vadd.f32 %v1337, %v1611
          %v1613 = vpop.f32.mrb[0].mxu0
          %v1614 = vpop.f32.mrb[0].mxu0
          %1615 = vdwg.mxu0
          %1616 = vmatprep.subr.bf16.mxu0 %v1045
          %1617 = vmatpush1.bf16.msra.mxu0 %v1044
          %1618 = vmatprep.subr.bf16.mxu0 %v1061
          %1619 = vmatpush1.bf16.msra.mxu0 %v1060
          %1620 = vmatprep.subr.bf16.mxu0 %v1077
          %1621 = vmatpush1.bf16.msra.mxu0 %v1076
          %1622 = vmatprep.subr.bf16.mxu0 %v1093
          %1623 = vmatpush1.bf16.msra.mxu0 %v1092
          %1624 = vmatprep.subr.bf16.mxu0 %v1109
          %1625 = vmatpush1.bf16.msra.mxu0 %v1108
          %1626 = vmatprep.subr.bf16.mxu0 %v1125
          %1627 = vmatpush1.bf16.msra.mxu0 %v1124
          %1628 = vmatprep.subr.bf16.mxu0 %v1141
          %1629 = vmatpush1.bf16.msra.mxu0 %v1140
          %1630 = vmatprep.subr.bf16.mxu0 %v1157
          %1631 = vmatpush1.bf16.msra.mxu0 %v1156
          %1632 = vmatprep.subr.bf16.mxu0 0
          %1633 = vmatpush1.bf16.msra.mxu0 0
          %1634 = vmatprep.subr.bf16.mxu0 0
          %1635 = vmatpush1.bf16.msra.mxu0 0
          %1636 = vmatprep.subr.bf16.mxu0 0
          %1637 = vmatpush1.bf16.msra.mxu0 0
          %1638 = vmatprep.subr.bf16.mxu0 0
          %1639 = vmatpush1.bf16.msra.mxu0 0
          %1640 = vmatprep.subr.bf16.mxu0 0
          %1641 = vmatpush1.bf16.msra.mxu0 0
          %1642 = vmatprep.subr.bf16.mxu0 0
          %1643 = vmatpush1.bf16.msra.mxu0 0
          %1644 = vmatprep.subr.bf16.mxu0 0
          %1645 = vmatpush1.bf16.msra.mxu0 0
          %1646 = vmatprep.subr.bf16.mxu0 0
          %1647 = vmatpush1.bf16.msra.mxu0 0
          %1648 = vmatprep.mubr.bf16.mxu0 0
          %1649 = vmatmul.mubr.bf16.gmra.mrb[0].mxu0 %v517
          %v1650 = vpop.f32.mrb[0].mxu0
          %v1651 = vadd.f32 %v1341, %v1650
          %v1652 = vpop.f32.mrb[0].mxu0
          %v1653 = vadd.f32 %v1345, %v1652
          %v1654 = vpop.f32.mrb[0].mxu0
          %v1655 = vpop.f32.mrb[0].mxu0
          %1656 = vdwg.mxu0
          %1657 = vmatprep.subr.bf16.mxu0 %v1047
          %1658 = vmatpush1.bf16.msra.mxu0 %v1046
          %1659 = vmatprep.subr.bf16.mxu0 %v1063
          %1660 = vmatpush1.bf16.msra.mxu0 %v1062
          %1661 = vmatprep.subr.bf16.mxu0 %v1079
          %1662 = vmatpush1.bf16.msra.mxu0 %v1078
          %1663 = vmatprep.subr.bf16.mxu0 %v1095
          %1664 = vmatpush1.bf16.msra.mxu0 %v1094
          %1665 = vmatprep.subr.bf16.mxu0 %v1111
          %1666 = vmatpush1.bf16.msra.mxu0 %v1110
          %1667 = vmatprep.subr.bf16.mxu0 %v1127
          %1668 = vmatpush1.bf16.msra.mxu0 %v1126
          %1669 = vmatprep.subr.bf16.mxu0 %v1143
          %1670 = vmatpush1.bf16.msra.mxu0 %v1142
          %1671 = vmatprep.subr.bf16.mxu0 %v1159
          %1672 = vmatpush1.bf16.msra.mxu0 %v1158
          %1673 = vmatprep.subr.bf16.mxu0 0
          %1674 = vmatpush1.bf16.msra.mxu0 0
          %1675 = vmatprep.subr.bf16.mxu0 0
          %1676 = vmatpush1.bf16.msra.mxu0 0
          %1677 = vmatprep.subr.bf16.mxu0 0
          %1678 = vmatpush1.bf16.msra.mxu0 0
          %1679 = vmatprep.subr.bf16.mxu0 0
          %1680 = vmatpush1.bf16.msra.mxu0 0
          %1681 = vmatprep.subr.bf16.mxu0 0
          %1682 = vmatpush1.bf16.msra.mxu0 0
          %1683 = vmatprep.subr.bf16.mxu0 0
          %1684 = vmatpush1.bf16.msra.mxu0 0
          %1685 = vmatprep.subr.bf16.mxu0 0
          %1686 = vmatpush1.bf16.msra.mxu0 0
          %1687 = vmatprep.subr.bf16.mxu0 0
          %1688 = vmatpush1.bf16.msra.mxu0 0
          %1689 = vmatprep.mubr.bf16.mxu0 0
          %1690 = vmatmul.mubr.bf16.gmra.mrb[0].mxu0 %v517
          %v1691 = vpop.f32.mrb[0].mxu0
          %v1692 = vadd.f32 %v1349, %v1691
          %v1693 = vpop.f32.mrb[0].mxu0
          %v1694 = vadd.f32 %v1353, %v1693
          %v1695 = vpop.f32.mrb[0].mxu0
          %v1696 = vpop.f32.mrb[0].mxu0
          %1697 = vdwg.mxu0
          %v1714 = vcombine.low %v1405, %v1407
          %v1715 = vcombine.low %v1446, %v1448
          %v1716 = vcombine.low %v1487, %v1489
          %v1717 = vcombine.low %v1528, %v1530
          %v1719 = vunpack.c.l.s4 1966171168
          %v1720 = vunpack.c.0.s8 %v1719
          %v1721 = vlaneseq
          %v1722 = vshrl.u32 %v1721, 7
          %v1723 = vsub.s32 %v1720, %v1722
          %v1724 = vrot.slane %v1714, %v1723
          %v1726 = vunpack.c.l.s4 1966171168
          %v1727 = vunpack.c.0.s8 %v1726
          %v1728 = vlaneseq
          %v1729 = vshrl.u32 %v1728, 7
          %v1730 = vsub.s32 %v1727, %v1729
          %v1731 = vrot.slane %v1715, %v1730
          %v1733 = vunpack.c.l.s4 1966171168
          %v1734 = vunpack.c.0.s8 %v1733
          %v1735 = vlaneseq
          %v1736 = vshrl.u32 %v1735, 7
          %v1737 = vsub.s32 %v1734, %v1736
          %v1738 = vrot.slane %v1716, %v1737
          %v1740 = vunpack.c.l.s4 1966171168
          %v1741 = vunpack.c.0.s8 %v1740
          %v1742 = vlaneseq
          %v1743 = vshrl.u32 %v1742, 7
          %v1744 = vsub.s32 %v1741, %v1743
          %v1745 = vrot.slane %v1717, %v1744
          %v1746 = vcombine.low %v1724, %v1731
          %v1747 = vcombine.low %v1738, %v1745
          %v1749 = vunpack.c.l.s4 1966171168
          %v1750 = vunpack.c.0.s8 %v1749
          %v1751 = vlaneseq
          %v1752 = vshrl.u32 %v1751, 7
          %v1753 = vsub.s32 %v1750, %v1752
          %v1754 = vrot.slane %v1746, %v1753
          %v1756 = vunpack.c.l.s4 1966171168
          %v1757 = vunpack.c.0.s8 %v1756
          %v1758 = vlaneseq
          %v1759 = vshrl.u32 %v1758, 7
          %v1760 = vsub.s32 %v1757, %v1759
          %v1761 = vrot.slane %v1747, %v1760
          %v1762 = vcombine.low %v1754, %v1761
          %v1763 = vcombine.low %v1569, %v1571
          %v1764 = vcombine.low %v1610, %v1612
          %v1765 = vcombine.low %v1651, %v1653
          %v1766 = vcombine.low %v1692, %v1694
          %v1768 = vunpack.c.l.s4 1966171168
          %v1769 = vunpack.c.0.s8 %v1768
          %v1770 = vlaneseq
          %v1771 = vshrl.u32 %v1770, 7
          %v1772 = vsub.s32 %v1769, %v1771
          %v1773 = vrot.slane %v1763, %v1772
          %v1775 = vunpack.c.l.s4 1966171168
          %v1776 = vunpack.c.0.s8 %v1775
          %v1777 = vlaneseq
          %v1778 = vshrl.u32 %v1777, 7
          %v1779 = vsub.s32 %v1776, %v1778
          %v1780 = vrot.slane %v1764, %v1779
          %v1782 = vunpack.c.l.s4 1966171168
          %v1783 = vunpack.c.0.s8 %v1782
          %v1784 = vlaneseq
          %v1785 = vshrl.u32 %v1784, 7
          %v1786 = vsub.s32 %v1783, %v1785
          %v1787 = vrot.slane %v1765, %v1786
          %v1789 = vunpack.c.l.s4 1966171168
          %v1790 = vunpack.c.0.s8 %v1789
          %v1791 = vlaneseq
          %v1792 = vshrl.u32 %v1791, 7
          %v1793 = vsub.s32 %v1790, %v1792
          %v1794 = vrot.slane %v1766, %v1793
          %v1795 = vcombine.low %v1773, %v1780
          %v1796 = vcombine.low %v1787, %v1794
          %v1798 = vunpack.c.l.s4 1966171168
          %v1799 = vunpack.c.0.s8 %v1798
          %v1800 = vlaneseq
          %v1801 = vshrl.u32 %v1800, 7
          %v1802 = vsub.s32 %v1799, %v1801
          %v1803 = vrot.slane %v1795, %v1802
          %v1805 = vunpack.c.l.s4 1966171168
          %v1806 = vunpack.c.0.s8 %v1805
          %v1807 = vlaneseq
          %v1808 = vshrl.u32 %v1807, 7
          %v1809 = vsub.s32 %v1806, %v1808
          %v1810 = vrot.slane %v1796, %v1809
          %v1811 = vcombine.low %v1803, %v1810
          %1814 = vst [vmem:[%s312] sm:$0xff] %v1762
          %1815 = vst [vmem:[%s312 + $0x8] sm:$0xff] %v1811
        $region68: #{tpu_custom_call.1} parent=39 // pred_fallthru
          _
        %s1816 = sand.u32 %s156, 1
        %s1817 = scalar_lea.sflag [#allocation5], %s1816
        %s1818 = sand.u32 %s156, 1
        %s1819 = smul.addr %s1818, 16
        %s1820 = scalar_lea.vmem [#allocation12], %s1819
        // Predicated region
        $region69: #{tpu_custom_call.1} parent=39 // pred_check
          %p1821 = pneg %p166
        $region70: #{tpu_custom_call.1} parent=39 // pred_check_branch
          %1823 = sbr.rel (%p1821) target = $region72
        $region71: #{tpu_custom_call.1} parent=39 // pred_region
          %s1825 = ssub.s32 256, 256
          %1826 = vsyncadd %s1817, %s1825
          %s1827 = smul.addr %s28, 16
          %s1828 = smul.addr %s1827, 16
          %s1829 = scalar_lea.hbm %s5, %s1828
          %s1831 = sshll.u32 %s1820, 4
          %s1832 = int_to_ptr.vmem [resolvable:$true] %s1831
          %1834 = dma.vmem_to_hbm [thread:$0]  %s1832, 256, %s1829, %s1817
        $region72: #{tpu_custom_call.1} parent=39 // pred_fallthru
          _
      $region40: #{tpu_custom_call.1} parent=5 // pred_fallthru
        _
      %p1835 = scmp.le.s32.totalorder 2, %s19
      // Predicated region
      $region73: #{tpu_custom_call.1} parent=5 // pred_check
        %p1836 = pneg %p1835
      $region74: #{tpu_custom_call.1} parent=5 // pred_check_branch
        %1838 = sbr.rel (%p1836) target = $region76
      $region75: #{tpu_custom_call.1} parent=5 // pred_region
        %s1839 = ssub.s32 %s19, 2
        // Predicated region
        $region77: #{tpu_custom_call.1} parent=75 // pred_check
          %p1840 = pneg %p172
        $region78: #{tpu_custom_call.1} parent=75 // pred_check_branch
          %1842 = sbr.rel (%p1840) target = $region80
        $region79: #{tpu_custom_call.1} parent=75 // pred_region
          %s1843 = sand.u32 %s157, 1
          %s1844 = scalar_lea.sflag [#allocation5], %s1843
          %s1845 = sand.u32 %s157, 1
          %s1846 = smul.addr %s1845, 16
          %s1847 = scalar_lea.vmem [#allocation12], %s1846
          %1848 = dma.done %s1844, 256
        $region80: #{tpu_custom_call.1} parent=75 // pred_fallthru
          _
      $region76: #{tpu_custom_call.1} parent=5 // pred_fallthru
        _
    $region6: #{tpu_custom_call.1} parent=1 // loop_footer
      %s23 = sadd.s32 1, %s19
    $region7: #{tpu_custom_call.1} parent=1 // loop_footer_branch
      %18 = sbr.rel target = $region3
    $region8: #{tpu_custom_call.1} parent=1 // loop_exit
      _
    %1849 = vsyncpa [#allocation4], 1
    %s1850 = scalar_lea.sflag [#allocation4], 1
    %1851 = vsyncpa %s1850, 1
    %1852 = vsyncpa [#allocation7], 1
    %1853 = vsyncpa [#allocation10], 1
    %1854 = vsyncpa [#allocation5], 1
    %s1855 = scalar_lea.sflag [#allocation5], 1
    %1856 = vsyncpa %s1855, 1

</llo_original>
